<compile_context>
chip_gen: v7x
topology: tpu7x:2x2x1
jax: 0.10.0
libtpu: 0.0.40
codegen_flags: <defaults>
</compile_context>

<pallas_src>
import functools

import jax
import jax.numpy as jnp
import numpy as np
from jax.experimental import pallas as pl
from jax.experimental.pallas import tpu as pltpu


def _round_up(x, m):
    return ((x + m - 1) // m) * m


# ----------------------------------------------------------------------------
# Pallas kernel: the whole forward hot path for one batch block.
# ----------------------------------------------------------------------------
def _actor_kernel(state_ref, w1_ref, w2_ref, w3_ref, wih_ref, wout_ref,
                  bias_ref, maskb_ref, out_ref, *, seg_off, gate_stride):
    f32 = jnp.float32

    def bias(name, n):
        o = seg_off[name]                     # static, 128-lane aligned offset
        return bias_ref[:, o:o + n]           # packed biases are stored f32

    def mm(a, w_ref):
        # Cast the activation to the (possibly bf16) weight dtype at the MXU
        # input; always accumulate in f32.
        return jnp.dot(a.astype(w_ref.dtype), w_ref[...],
                       preferred_element_type=f32)

    def swish(v):
        return v * jax.nn.sigmoid(v)

    hidden = w1_ref.shape[1]
    x = state_ref[...].astype(f32)
    x = swish(mm(x, w1_ref) + bias("b1", hidden))
    x = swish(mm(x, w2_ref) + bias("b2", hidden))
    x = swish(mm(x, w3_ref) + bias("b3", hidden))

    # LayerNorm over the feature dim (torch default: biased var, eps = 1e-5).
    # The affine (gamma/beta) was folded into the LSTM input projection on the
    # host, so only normalization remains.  xm is hoisted once (guaranteed CSE)
    # so both reductions read the same value.
    mean = jnp.mean(x, axis=-1, keepdims=True)
    xm = x - mean
    var = jnp.mean(xm * xm, axis=-1, keepdims=True)
    x = xm * jax.lax.rsqrt(var + 1e-5)

    # Single-timestep LSTM with hidden=None (h0 = c0 = 0): the forget gate is
    # dead code and was dropped on the host.  Live gate blocks are laid out as
    # [ i | g | o ] with lane stride `gate_stride` (compact single 128-lane
    # group when 3*L <= 128, otherwise each block padded to 128 lanes).
    G = gate_stride
    gates = mm(x, wih_ref) + bias("b_gates", wih_ref.shape[1])
    i_g = jax.nn.sigmoid(gates[:, 0 * G:0 * G + G])
    g_g = jnp.tanh(gates[:, 1 * G:1 * G + G])
    o_g = jax.nn.sigmoid(gates[:, 2 * G:2 * G + G])
    h = o_g * jnp.tanh(i_g * g_g)             # lstm_out

    # pick/bury/play heads, the 0/1 scatter and the -1e8 base fill were folded
    # on the host into a single (G, A_pad) weight + (1, A_pad) bias.
    a_pad = wout_ref.shape[1]
    logits = mm(h, wout_ref) + bias("b_out", a_pad)

    # Additive mask bias (0 = allowed, -1e8 = masked), stored bf16.  Replaces
    # masked_fill: masked lanes end up <= -1e8 and underflow to 0 in softmax.
    logits = logits + maskb_ref[...].astype(f32)

    # Softmax over the lane-padded action dim; padded lanes sit at -1e8 and
    # underflow to exactly 0 after exp, so the real probabilities match the
    # unpadded softmax.  (Degenerate all-masked rows are not special-cased.)
    m = jnp.max(logits, axis=-1, keepdims=True)
    e = jnp.exp(logits - m)
    denom = jnp.sum(e, axis=-1, keepdims=True)
    inv = pl.reciprocal(denom, approx=True)   # EUP slot (co-issues with VALU)
    inv = inv * (2.0 - denom * inv)           # one Newton step -> ~f32 exact
    out_ref[...] = (e * inv).astype(out_ref.dtype)


# ----------------------------------------------------------------------------
# Host-side parameter folding / packing (done once, outside the hot path).
# ----------------------------------------------------------------------------
def pack_params(params, action_size, *, mxu_dtype=jnp.float32):
    """Fold LayerNorm affine + scatter + base into the matmul weights, drop the
    dead forget gate, lane-pack the gates, and pack all (1, N) vectors into one
    lane-aligned f32 array.

    mxu_dtype=jnp.bfloat16 halves weight DMA/VMEM on all TPU generations
    (v5e/v6e/v7x MXUs consume bf16 natively); biases and every elementwise op
    stay in f32 inside the kernel."""
    hidden = params["w1"].shape[1]
    L = params["w_ih"].shape[1] // 4
    A = action_size
    A_pad = _round_up(A, 128)

    # --- fold LayerNorm affine into the LSTM input projection ---------------
    #   (xn * g + b) @ W + b0  ==  xn @ (diag(g) W) + (b @ W + b0)
    w_ih_f = params["w_ih"] * params["ln_g"].reshape(-1, 1)
    b_gates_f = params["ln_b"] @ params["w_ih"] + params["b_gates"]

    # --- drop forget gate (c0 == 0); torch gate order is [i | f | g | o] ----
    def gate(k):
        return (w_ih_f[:, k * L:(k + 1) * L], b_gates_f[:, k * L:(k + 1) * L])

    (wi, bi), (wg, bg), (wo, bo) = gate(0), gate(2), gate(3)

    if 3 * L <= 128:
        # Compact: all three gates inside one 128-lane group (gate matmul
        # N-dim = 128 instead of 3*128).
        gate_stride, h_width, gates_pad = L, L, 128
        w_g = jnp.concatenate([wi, wg, wo], axis=1)
        b_g = jnp.concatenate([bi, bg, bo], axis=1)
    else:
        # Each live gate block lane-padded to a 128 multiple (aligned slices);
        # padded lanes produce h == 0 exactly.
        Lp = _round_up(L, 128)
        gate_stride, h_width, gates_pad = Lp, Lp, 3 * Lp
        pad = lambda v: jnp.pad(v, ((0, 0), (0, Lp - L)))
        w_g = jnp.concatenate([pad(wi), pad(wg), pad(wo)], axis=1)
        b_g = jnp.concatenate([pad(bi), pad(bg), pad(bo)], axis=1)
    w_g = jnp.pad(w_g, ((0, 0), (0, gates_pad - w_g.shape[1])))
    b_g = jnp.pad(b_g, ((0, 0), (0, gates_pad - b_g.shape[1])))

    # --- fold pick/bury/play heads + scatter + base fill into one matmul ----
    w_out = params["w_heads"] @ params["scatter"]                    # (L, A)
    b_out = params["b_heads"] @ params["scatter"] + params["base"]   # (1, A)
    w_out = jnp.pad(w_out, ((0, h_width - L), (0, A_pad - A)))
    b_out = jnp.pad(b_out, ((0, 0), (0, A_pad - A)),
                    constant_values=-1.0e8)

    # --- pack every small (1, N) parameter into one lane-aligned f32 array --
    segs = [("b1", params["b1"]), ("b2", params["b2"]), ("b3", params["b3"]),
            ("b_gates", b_g), ("b_out", b_out)]
    seg_off, chunks, off = {}, [], 0
    for name, v in segs:
        n_pad = _round_up(v.shape[1], 128)
        seg_off[name] = off
        chunks.append(jnp.pad(v, ((0, 0), (0, n_pad - v.shape[1]))))
        off += n_pad
    bias_packed = jnp.concatenate(chunks, axis=1).astype(jnp.float32)

    cast = lambda w: w.astype(mxu_dtype)
    return dict(
        w1=cast(params["w1"]), w2=cast(params["w2"]), w3=cast(params["w3"]),
        w_gates=cast(w_g), w_out=cast(w_out),
        bias=bias_packed,
        hidden=hidden, gate_stride=gate_stride,
        action_size=A, action_pad=A_pad,
        seg_off=seg_off,
    )


def _estimate_vmem(packed, TB, S, A_pad, out_bytes):
    """Explicit scoped-VMEM budget (with headroom) so large batch tiles land
    on all generations (v5e default is only 16 MiB)."""
    def nbytes(a):
        return int(np.prod(a.shape)) * jnp.dtype(a.dtype).itemsize

    weights = sum(nbytes(packed[k])
                  for k in ("w1", "w2", "w3", "w_gates", "w_out", "bias"))
    streams = 2 * TB * (S * 4 + A_pad * 2 + A_pad * out_bytes)  # double-buffered
    hidden = packed["hidden"]
    gates = int(packed["w_gates"].shape[1])
    work = 4 * TB * (4 * hidden + 2 * gates + 3 * A_pad)        # live activations
    est = 2 * weights + streams + work        # assume worst case (2x weights)
    return int(min(max(est * 3 // 2 + (4 << 20), 32 << 20), 48 << 20))


# ----------------------------------------------------------------------------
# Wrapper: batch/lane padding + pallas_call with a batch grid.
# ----------------------------------------------------------------------------
def multi_head_recurrent_actor(state, packed, action_mask=None, *,
                               block_batch=512, out_dtype=jnp.float32,
                               vmem_limit_bytes=None):
    """state: (B, state_size) f32; action_mask: (B, action_size) {0,1} or None.
    Returns softmax probabilities (B, action_size) in `out_dtype`."""
    B, S = state.shape
    A = packed["action_size"]
    A_pad = packed["action_pad"]

    if action_mask is None:
        action_mask = jnp.ones((B, A), jnp.float32)
    # Additive mask bias: 0 where allowed, -1e8 where masked; bf16 halves the
    # mask HBM stream and removes the in-kernel compare+select.
    mask_bias = jnp.where(action_mask.astype(jnp.float32) > 0.5,
                          0.0, -1.0e8).astype(jnp.bfloat16)

    # Batch tile: biggest multiple of 8 up to block_batch; when the batch is
    # large enough, split so the grid has >= 2 steps and both v7x TensorCores
    # get work via the "parallel" axis (one harmless extra step on v5e/v6e).
    Bp8 = _round_up(B, 8)
    TB = min(_round_up(block_batch, 8), Bp8)
    if Bp8 // TB < 2 and Bp8 >= 256:
        TB = _round_up((Bp8 + 1) // 2, 8)
    Bp = _round_up(B, TB)

    state_p = jnp.pad(state.astype(jnp.float32), ((0, Bp - B), (0, 0)))
    mask_p = jnp.pad(mask_bias, ((0, Bp - B), (0, A_pad - A)))

    if vmem_limit_bytes is None:
        vmem_limit_bytes = _estimate_vmem(packed, TB, S, A_pad,
                                          jnp.dtype(out_dtype).itemsize)

    kernel = functools.partial(_actor_kernel,
                               seg_off=packed["seg_off"],
                               gate_stride=packed["gate_stride"])

    def resident_single(shape):
        # Grid-invariant operand: keep ONE VMEM copy (no dead second buffer).
        return pl.BlockSpec(shape, lambda i: (0, 0),
                            pipeline_mode=pl.Buffered(1))

    def resident_default(shape):
        return pl.BlockSpec(shape, lambda i: (0, 0))

    def call(res_spec):
        return pl.pallas_call(
            kernel,
            out_shape=jax.ShapeDtypeStruct((Bp, A_pad), out_dtype),
            grid_spec=pltpu.PrefetchScalarGridSpec(
                num_scalar_prefetch=0,
                grid=(Bp // TB,),
                in_specs=[
                    pl.BlockSpec((TB, S), lambda i: (i, 0)),        # state
                    res_spec(packed["w1"].shape),
                    res_spec(packed["w2"].shape),
                    res_spec(packed["w3"].shape),
                    res_spec(packed["w_gates"].shape),
                    res_spec(packed["w_out"].shape),
                    res_spec(packed["bias"].shape),
                    pl.BlockSpec((TB, A_pad), lambda i: (i, 0)),    # mask bias
                ],
                out_specs=pl.BlockSpec((TB, A_pad), lambda i: (i, 0)),
            ),
            compiler_params=pltpu.CompilerParams(
                dimension_semantics=("parallel",),
                vmem_limit_bytes=vmem_limit_bytes),
        )(state_p, packed["w1"], packed["w2"], packed["w3"],
          packed["w_gates"], packed["w_out"], packed["bias"], mask_p)

    try:
        out = call(resident_single)
    except Exception:
        # pl.Buffered(1) not supported by this JAX/Mosaic build -> fall back
        # to the default double-buffered resident weights (correctness same).
        out = call(resident_default)

    return out[:B, :A]


# ----------------------------------------------------------------------------
# Pure-JAX reference (mirrors the torch module, raw params) for sanity check.
# ----------------------------------------------------------------------------
def _reference(state, params, action_mask):
    def swish(v):
        return v * jax.nn.sigmoid(v)

    L = params["w_ih"].shape[1] // 4
    x = swish(state @ params["w1"] + params["b1"])
    x = swish(x @ params["w2"] + params["b2"])
    x = swish(x @ params["w3"] + params["b3"])
    mean = jnp.mean(x, axis=-1, keepdims=True)
    var = jnp.mean((x - mean) ** 2, axis=-1, keepdims=True)
    x = (x - mean) / jnp.sqrt(var + 1e-5) * params["ln_g"] + params["ln_b"]
    gates = x @ params["w_ih"] + params["b_gates"]
    i_g = jax.nn.sigmoid(gates[:, 0 * L:1 * L])
    g_g = jnp.tanh(gates[:, 2 * L:3 * L])
    o_g = jax.nn.sigmoid(gates[:, 3 * L:4 * L])
    h = o_g * jnp.tanh(i_g * g_g)
    head = h @ params["w_heads"] + params["b_heads"]
    logits = head @ params["scatter"] + params["base"]
    logits = jnp.where(action_mask > 0.5, logits, -1.0e8)
    return jax.nn.softmax(logits, axis=-1)


# ----------------------------------------------------------------------------
# Deterministic parameter construction (synthetic init, torch-like shapes).
# The torch module zero-inits all biases and leaves LayerNorm at gamma=1,
# beta=0; we perturb them slightly so the host-side folds are exercised.
# ----------------------------------------------------------------------------
def make_params(key, state_size, hidden_size, lstm_size, action_groups, action_size):
    ks = jax.random.split(key, 10)
    scale = 0.1
    n_pick = len(action_groups["pick"])
    n_bury = len(action_groups["bury"])
    n_play = len(action_groups["play"])
    n_heads = n_pick + n_bury + n_play

    params = dict(
        w1=scale * jax.random.normal(ks[0], (state_size, hidden_size), jnp.float32),
        b1=0.05 * jax.random.normal(ks[5], (1, hidden_size), jnp.float32),
        w2=scale * jax.random.normal(ks[1], (hidden_size, hidden_size), jnp.float32),
        b2=0.05 * jax.random.normal(ks[6], (1, hidden_size), jnp.float32),
        w3=scale * jax.random.normal(ks[2], (hidden_size, hidden_size), jnp.float32),
        b3=0.05 * jax.random.normal(ks[7], (1, hidden_size), jnp.float32),
        ln_g=1.0 + 0.1 * jax.random.normal(ks[8], (1, hidden_size), jnp.float32),
        ln_b=0.1 * jax.random.normal(ks[9], (1, hidden_size), jnp.float32),
        # LSTM input->gates weights, columns ordered [i | f | g | o] like torch.
        w_ih=scale * jax.random.normal(ks[3], (hidden_size, 4 * lstm_size), jnp.float32),
        # b_ih + b_hh combined.
        b_gates=0.05 * jax.random.normal(ks[4], (1, 4 * lstm_size), jnp.float32),
        # pick/bury/play head weights concatenated along the output dim.
        w_heads=scale * jax.random.normal(ks[0], (lstm_size, n_heads), jnp.float32),
        b_heads=0.05 * jax.random.normal(ks[1], (1, n_heads), jnp.float32),
    )

    # Scatter matrix: row j places head output j at its action index.
    all_idx = (list(action_groups["pick"]) + list(action_groups["bury"])
               + list(action_groups["play"]))
    scatter = np.zeros((n_heads, action_size), np.float32)
    covered = np.zeros((action_size,), bool)
    for j, a in enumerate(all_idx):
        scatter[j, a] = 1.0
        covered[a] = True
    base = np.where(covered, 0.0, -1.0e8).astype(np.float32)[None, :]
    params["scatter"] = jnp.asarray(scatter)
    params["base"] = jnp.asarray(base)
    return params


if __name__ == "__main__":
    # Small shapes consistent with the module's forward.
    batch = 2
    state_size = 16
    hidden_size = 32
    lstm_size = 32
    action_size = 16
    action_groups = {
        "pick": [0, 1],
        "bury": [2, 3, 4, 5],
        "play": [6, 7, 8, 9, 10, 11, 12, 13],   # indices 14, 15 stay at -1e8
    }

    key = jax.random.PRNGKey(0)
    k_state, k_params, k_big = jax.random.split(key, 3)
    state = jax.random.normal(k_state, (batch, state_size), jnp.float32)
    params = make_params(k_params, state_size, hidden_size, lstm_size,
                         action_groups, action_size)

    # action mask: allow everything except action 3 for batch element 0.
    mask = np.ones((batch, action_size), np.float32)
    mask[0, 3] = 0.0
    mask = jnp.asarray(mask)

    ref = _reference(state, params, mask)

    # f32-weight path (exact modulo f32 reassociation of the host-side folds).
    packed_f32 = pack_params(params, action_size, mxu_dtype=jnp.float32)
    out = jax.block_until_ready(multi_head_recurrent_actor(state, packed_f32, mask))
    np.testing.assert_allclose(np.asarray(out), np.asarray(ref), rtol=3e-5, atol=2e-5)
    np.testing.assert_allclose(np.asarray(out).sum(-1), np.ones(batch),
                               rtol=1e-5, atol=1e-5)

    # Larger batch: exercises the multi-step "parallel" grid (>= 2 blocks, the
    # automatic tile split for the 2-TensorCore case) and random masking.
    big_batch = 272
    state_b = jax.random.normal(k_big, (big_batch, state_size), jnp.float32)
    mask_b = (jax.random.uniform(jax.random.PRNGKey(1),
                                 (big_batch, action_size)) > 0.2).astype(jnp.float32)
    mask_b = mask_b.at[:, 0].set(1.0)   # avoid the degenerate all-masked row
    ref_b = _reference(state_b, params, mask_b)
    out_b = jax.block_until_ready(
        multi_head_recurrent_actor(state_b, packed_f32, mask_b))
    np.testing.assert_allclose(np.asarray(out_b), np.asarray(ref_b),
                               rtol=3e-5, atol=2e-5)

    # bf16-weight MXU path (recommended on all generations) with bf16 output;
    # biases and elementwise math stay f32 inside the kernel.
    packed_bf16 = pack_params(params, action_size, mxu_dtype=jnp.bfloat16)
    out_bf16 = jax.block_until_ready(
        multi_head_recurrent_actor(state, packed_bf16, mask,
                                   out_dtype=jnp.bfloat16))
    np.testing.assert_allclose(np.asarray(out_bf16).astype(np.float32),
                               np.asarray(ref), atol=2e-2)

    # TODO(synk): the torch module's per-player persistent hidden-state cache
    # (player_id path) is host-side Python state and is not part of the kernel.
    print("KERNEL_OK")
</pallas_src>

<mosaic_0001>
module attributes {stable_mosaic.version = 11 : i64} {
  func.func @_actor_kernel(%arg0: i32, %arg1: memref<8x16xf32, #tpu.memory_space<vmem>>, %arg2: memref<16x32xf32, #tpu.memory_space<vmem>>, %arg3: memref<32x32xf32, #tpu.memory_space<vmem>>, %arg4: memref<32x32xf32, #tpu.memory_space<vmem>>, %arg5: memref<32x128xf32, #tpu.memory_space<vmem>>, %arg6: memref<32x128xf32, #tpu.memory_space<vmem>>, %arg7: memref<1x640xf32, #tpu.memory_space<vmem>>, %arg8: memref<8x128xbf16, #tpu.memory_space<vmem>>, %arg9: memref<8x128xf32, #tpu.memory_space<vmem>>) attributes {dimension_semantics = [#tpu.dimension_semantics<parallel>], iteration_bounds = array<i64: 1>, scalar_prefetch = 0 : i64, scratch_operands = 0 : i64, tpu.core_type = #tpu.core_type<tc>, window_params = [{transform_indices = @transform_0, window_bounds = array<i64: 8, 16>}, {pipeline_mode = #tpu.pipeline_mode<synchronous>, transform_indices = @transform_1, window_bounds = array<i64: 16, 32>}, {pipeline_mode = #tpu.pipeline_mode<synchronous>, transform_indices = @transform_2, window_bounds = array<i64: 32, 32>}, {pipeline_mode = #tpu.pipeline_mode<synchronous>, transform_indices = @transform_3, window_bounds = array<i64: 32, 32>}, {pipeline_mode = #tpu.pipeline_mode<synchronous>, transform_indices = @transform_4, window_bounds = array<i64: 32, 128>}, {pipeline_mode = #tpu.pipeline_mode<synchronous>, transform_indices = @transform_5, window_bounds = array<i64: 32, 128>}, {pipeline_mode = #tpu.pipeline_mode<synchronous>, transform_indices = @transform_6, window_bounds = array<i64: 1, 640>}, {transform_indices = @transform_7, window_bounds = array<i64: 8, 128>}, {transform_indices = @transform_8, window_bounds = array<i64: 8, 128>}]} {
    %c0 = arith.constant 0 : index
    %c0_0 = arith.constant 0 : index
    %0 = vector.load %arg1[%c0, %c0_0] : memref<8x16xf32, #tpu.memory_space<vmem>>, vector<8x16xf32>
    %c0_1 = arith.constant 0 : index
    %c0_2 = arith.constant 0 : index
    %1 = vector.load %arg2[%c0_1, %c0_2] : memref<16x32xf32, #tpu.memory_space<vmem>>, vector<16x32xf32>
    %cst = arith.constant dense<0.000000e+00> : vector<8x32xf32>
    %2 = tpu.matmul %0, %1, %cst {dimension_numbers = #tpu.dot_dimension_numbers<[1], [0], [0], [1], [0, 0, 1, 1], [], []>} : vector<8x16xf32>, vector<16x32xf32>, vector<8x32xf32> -> vector<8x32xf32>
    %c0_3 = arith.constant 0 : index
    %c0_4 = arith.constant 0 : index
    %3 = vector.load %arg7[%c0_3, %c0_4] : memref<1x640xf32, #tpu.memory_space<vmem>>, vector<1x32xf32>
    %4 = vector.broadcast %3 : vector<1x32xf32> to vector<8x32xf32>
    %5 = arith.addf %2, %4 : vector<8x32xf32>
    %6 = arith.negf %5 : vector<8x32xf32>
    %7 = math.exp %6 : vector<8x32xf32>
    %cst_5 = arith.constant 1.000000e+00 : f32
    %8 = vector.broadcast %cst_5 : f32 to vector<8x32xf32>
    %9 = arith.addf %8, %7 : vector<8x32xf32>
    %10 = arith.divf %8, %9 : vector<8x32xf32>
    %11 = arith.mulf %5, %10 : vector<8x32xf32>
    %c0_6 = arith.constant 0 : index
    %c0_7 = arith.constant 0 : index
    %12 = vector.load %arg3[%c0_6, %c0_7] : memref<32x32xf32, #tpu.memory_space<vmem>>, vector<32x32xf32>
    %cst_8 = arith.constant dense<0.000000e+00> : vector<8x32xf32>
    %13 = tpu.matmul %11, %12, %cst_8 {dimension_numbers = #tpu.dot_dimension_numbers<[1], [0], [0], [1], [0, 0, 1, 1], [], []>} : vector<8x32xf32>, vector<32x32xf32>, vector<8x32xf32> -> vector<8x32xf32>
    %c0_9 = arith.constant 0 : index
    %c128 = arith.constant 128 : index
    %14 = vector.load %arg7[%c0_9, %c128] : memref<1x640xf32, #tpu.memory_space<vmem>>, vector<1x32xf32>
    %15 = vector.broadcast %14 : vector<1x32xf32> to vector<8x32xf32>
    %16 = arith.addf %13, %15 : vector<8x32xf32>
    %17 = arith.negf %16 : vector<8x32xf32>
    %18 = math.exp %17 : vector<8x32xf32>
    %cst_10 = arith.constant 1.000000e+00 : f32
    %19 = vector.broadcast %cst_10 : f32 to vector<8x32xf32>
    %20 = arith.addf %19, %18 : vector<8x32xf32>
    %21 = arith.divf %19, %20 : vector<8x32xf32>
    %22 = arith.mulf %16, %21 : vector<8x32xf32>
    %c0_11 = arith.constant 0 : index
    %c0_12 = arith.constant 0 : index
    %23 = vector.load %arg4[%c0_11, %c0_12] : memref<32x32xf32, #tpu.memory_space<vmem>>, vector<32x32xf32>
    %cst_13 = arith.constant dense<0.000000e+00> : vector<8x32xf32>
    %24 = tpu.matmul %22, %23, %cst_13 {dimension_numbers = #tpu.dot_dimension_numbers<[1], [0], [0], [1], [0, 0, 1, 1], [], []>} : vector<8x32xf32>, vector<32x32xf32>, vector<8x32xf32> -> vector<8x32xf32>
    %c0_14 = arith.constant 0 : index
    %c256 = arith.constant 256 : index
    %25 = vector.load %arg7[%c0_14, %c256] : memref<1x640xf32, #tpu.memory_space<vmem>>, vector<1x32xf32>
    %26 = vector.broadcast %25 : vector<1x32xf32> to vector<8x32xf32>
    %27 = arith.addf %24, %26 : vector<8x32xf32>
    %28 = arith.negf %27 : vector<8x32xf32>
    %29 = math.exp %28 : vector<8x32xf32>
    %cst_15 = arith.constant 1.000000e+00 : f32
    %30 = vector.broadcast %cst_15 : f32 to vector<8x32xf32>
    %31 = arith.addf %30, %29 : vector<8x32xf32>
    %32 = arith.divf %30, %31 : vector<8x32xf32>
    %33 = arith.mulf %27, %32 : vector<8x32xf32>
    %cst_16 = arith.constant dense<0.000000e+00> : vector<8xf32>
    %34 = vector.multi_reduction <add>, %33, %cst_16 [1] : vector<8x32xf32> to vector<8xf32>
    %35 = vector.shape_cast %34 : vector<8xf32> to vector<8x1xf32>
    %cst_17 = arith.constant 3.200000e+01 : f32
    %36 = vector.broadcast %cst_17 : f32 to vector<8x1xf32>
    %37 = arith.divf %35, %36 : vector<8x1xf32>
    %38 = vector.broadcast %37 : vector<8x1xf32> to vector<8x32xf32>
    %39 = arith.subf %33, %38 : vector<8x32xf32>
    %40 = arith.mulf %39, %39 : vector<8x32xf32>
    %cst_18 = arith.constant dense<0.000000e+00> : vector<8xf32>
    %41 = vector.multi_reduction <add>, %40, %cst_18 [1] : vector<8x32xf32> to vector<8xf32>
    %42 = vector.shape_cast %41 : vector<8xf32> to vector<8x1xf32>
    %cst_19 = arith.constant 3.200000e+01 : f32
    %43 = vector.broadcast %cst_19 : f32 to vector<8x1xf32>
    %44 = arith.divf %42, %43 : vector<8x1xf32>
    %cst_20 = arith.constant 9.99999974E-6 : f32
    %45 = vector.broadcast %cst_20 : f32 to vector<8x1xf32>
    %46 = arith.addf %44, %45 : vector<8x1xf32>
    %47 = math.rsqrt %46 : vector<8x1xf32>
    %48 = vector.broadcast %47 : vector<8x1xf32> to vector<8x32xf32>
    %49 = arith.mulf %39, %48 : vector<8x32xf32>
    %c0_21 = arith.constant 0 : index
    %c0_22 = arith.constant 0 : index
    %50 = vector.load %arg5[%c0_21, %c0_22] : memref<32x128xf32, #tpu.memory_space<vmem>>, vector<32x128xf32>
    %cst_23 = arith.constant dense<0.000000e+00> : vector<8x128xf32>
    %51 = tpu.matmul %49, %50, %cst_23 {dimension_numbers = #tpu.dot_dimension_numbers<[1], [0], [0], [1], [0, 0, 1, 1], [], []>} : vector<8x32xf32>, vector<32x128xf32>, vector<8x128xf32> -> vector<8x128xf32>
    %c0_24 = arith.constant 0 : index
    %c384 = arith.constant 384 : index
    %52 = vector.load %arg7[%c0_24, %c384] : memref<1x640xf32, #tpu.memory_space<vmem>>, vector<1x128xf32>
    %53 = vector.broadcast %52 : vector<1x128xf32> to vector<8x128xf32>
    %54 = arith.addf %51, %53 : vector<8x128xf32>
    %55 = vector.extract_strided_slice %54 {offsets = [0, 0], sizes = [8, 32], strides = [1, 1]} : vector<8x128xf32> to vector<8x32xf32>
    %56 = arith.negf %55 : vector<8x32xf32>
    %57 = math.exp %56 : vector<8x32xf32>
    %cst_25 = arith.constant 1.000000e+00 : f32
    %58 = vector.broadcast %cst_25 : f32 to vector<8x32xf32>
    %59 = arith.addf %58, %57 : vector<8x32xf32>
    %60 = arith.divf %58, %59 : vector<8x32xf32>
    %61 = vector.extract_strided_slice %54 {offsets = [0, 32], sizes = [8, 32], strides = [1, 1]} : vector<8x128xf32> to vector<8x32xf32>
    %62 = math.tanh %61 : vector<8x32xf32>
    %63 = vector.extract_strided_slice %54 {offsets = [0, 64], sizes = [8, 32], strides = [1, 1]} : vector<8x128xf32> to vector<8x32xf32>
    %64 = arith.negf %63 : vector<8x32xf32>
    %65 = math.exp %64 : vector<8x32xf32>
    %cst_26 = arith.constant 1.000000e+00 : f32
    %66 = vector.broadcast %cst_26 : f32 to vector<8x32xf32>
    %67 = arith.addf %66, %65 : vector<8x32xf32>
    %68 = arith.divf %66, %67 : vector<8x32xf32>
    %69 = arith.mulf %60, %62 : vector<8x32xf32>
    %70 = math.tanh %69 : vector<8x32xf32>
    %71 = arith.mulf %68, %70 : vector<8x32xf32>
    %c0_27 = arith.constant 0 : index
    %c0_28 = arith.constant 0 : index
    %72 = vector.load %arg6[%c0_27, %c0_28] : memref<32x128xf32, #tpu.memory_space<vmem>>, vector<32x128xf32>
    %cst_29 = arith.constant dense<0.000000e+00> : vector<8x128xf32>
    %73 = tpu.matmul %71, %72, %cst_29 {dimension_numbers = #tpu.dot_dimension_numbers<[1], [0], [0], [1], [0, 0, 1, 1], [], []>} : vector<8x32xf32>, vector<32x128xf32>, vector<8x128xf32> -> vector<8x128xf32>
    %c0_30 = arith.constant 0 : index
    %c512 = arith.constant 512 : index
    %74 = vector.load %arg7[%c0_30, %c512] : memref<1x640xf32, #tpu.memory_space<vmem>>, vector<1x128xf32>
    %75 = vector.broadcast %74 : vector<1x128xf32> to vector<8x128xf32>
    %76 = arith.addf %73, %75 : vector<8x128xf32>
    %c0_31 = arith.constant 0 : index
    %c0_32 = arith.constant 0 : index
    %77 = vector.load %arg8[%c0_31, %c0_32] : memref<8x128xbf16, #tpu.memory_space<vmem>>, vector<8x128xbf16>
    %78 = arith.extf %77 : vector<8x128xbf16> to vector<8x128xf32>
    %79 = arith.addf %76, %78 : vector<8x128xf32>
    %cst_33 = arith.constant dense<0xFF800000> : vector<8xf32>
    %80 = vector.multi_reduction <maximumf>, %79, %cst_33 [1] : vector<8x128xf32> to vector<8xf32>
    %81 = vector.shape_cast %80 : vector<8xf32> to vector<8x1xf32>
    %82 = vector.broadcast %81 : vector<8x1xf32> to vector<8x128xf32>
    %83 = arith.subf %79, %82 : vector<8x128xf32>
    %84 = math.exp %83 : vector<8x128xf32>
    %cst_34 = arith.constant dense<0.000000e+00> : vector<8xf32>
    %85 = vector.multi_reduction <add>, %84, %cst_34 [1] : vector<8x128xf32> to vector<8xf32>
    %86 = vector.shape_cast %85 : vector<8xf32> to vector<8x1xf32>
    %87 = tpu.reciprocal %86 {approx = true} : vector<8x1xf32> -> vector<8x1xf32>
    %88 = arith.mulf %86, %87 : vector<8x1xf32>
    %cst_35 = arith.constant 2.000000e+00 : f32
    %89 = vector.broadcast %cst_35 : f32 to vector<8x1xf32>
    %90 = arith.subf %89, %88 : vector<8x1xf32>
    %91 = arith.mulf %87, %90 : vector<8x1xf32>
    %92 = vector.broadcast %91 : vector<8x1xf32> to vector<8x128xf32>
    %93 = arith.mulf %84, %92 : vector<8x128xf32>
    %c0_36 = arith.constant 0 : index
    %c0_37 = arith.constant 0 : index
    %94 = vector.load %arg9[%c0_36, %c0_37] : memref<8x128xf32, #tpu.memory_space<vmem>>, vector<8x128xf32>
    tpu.vector_store %arg9[%c0_36, %c0_37], %93 {strides = array<i32>} : memref<8x128xf32, #tpu.memory_space<vmem>>, vector<8x128xf32>,
    return
  }
  func.func @transform_0(%arg0: i32) -> (i32, i32) {
    %c0_i32 = arith.constant 0 : i32
    %c0_i32_0 = arith.constant 0 : i32
    return %arg0, %c0_i32 : i32, i32
  }
  func.func @transform_1(%arg0: i32) -> (i32, i32) {
    %c0_i32 = arith.constant 0 : i32
    %c0_i32_0 = arith.constant 0 : i32
    %c0_i32_1 = arith.constant 0 : i32
    return %c0_i32, %c0_i32_0 : i32, i32
  }
  func.func @transform_2(%arg0: i32) -> (i32, i32) {
    %c0_i32 = arith.constant 0 : i32
    %c0_i32_0 = arith.constant 0 : i32
    %c0_i32_1 = arith.constant 0 : i32
    return %c0_i32, %c0_i32_0 : i32, i32
  }
  func.func @transform_3(%arg0: i32) -> (i32, i32) {
    %c0_i32 = arith.constant 0 : i32
    %c0_i32_0 = arith.constant 0 : i32
    %c0_i32_1 = arith.constant 0 : i32
    return %c0_i32, %c0_i32_0 : i32, i32
  }
  func.func @transform_4(%arg0: i32) -> (i32, i32) {
    %c0_i32 = arith.constant 0 : i32
    %c0_i32_0 = arith.constant 0 : i32
    %c0_i32_1 = arith.constant 0 : i32
    return %c0_i32, %c0_i32_0 : i32, i32
  }
  func.func @transform_5(%arg0: i32) -> (i32, i32) {
    %c0_i32 = arith.constant 0 : i32
    %c0_i32_0 = arith.constant 0 : i32
    %c0_i32_1 = arith.constant 0 : i32
    return %c0_i32, %c0_i32_0 : i32, i32
  }
  func.func @transform_6(%arg0: i32) -> (i32, i32) {
    %c0_i32 = arith.constant 0 : i32
    %c0_i32_0 = arith.constant 0 : i32
    %c0_i32_1 = arith.constant 0 : i32
    return %c0_i32, %c0_i32_0 : i32, i32
  }
  func.func @transform_7(%arg0: i32) -> (i32, i32) {
    %c0_i32 = arith.constant 0 : i32
    %c0_i32_0 = arith.constant 0 : i32
    return %arg0, %c0_i32 : i32, i32
  }
  func.func @transform_8(%arg0: i32) -> (i32, i32) {
    %c0_i32 = arith.constant 0 : i32
    %c0_i32_0 = arith.constant 0 : i32
    return %arg0, %c0_i32 : i32, i32
  }
}

module attributes {stable_mosaic.version = 11 : i64} {
  func.func @_actor_kernel(%arg0: i32, %arg1: memref<8x16xf32, #tpu.memory_space<vmem>>, %arg2: memref<16x32xf32, #tpu.memory_space<vmem>>, %arg3: memref<32x32xf32, #tpu.memory_space<vmem>>, %arg4: memref<32x32xf32, #tpu.memory_space<vmem>>, %arg5: memref<32x128xf32, #tpu.memory_space<vmem>>, %arg6: memref<32x128xf32, #tpu.memory_space<vmem>>, %arg7: memref<1x640xf32, #tpu.memory_space<vmem>>, %arg8: memref<8x128xbf16, #tpu.memory_space<vmem>>, %arg9: memref<8x128xf32, #tpu.memory_space<vmem>>) attributes {dimension_semantics = [#tpu.dimension_semantics<parallel>], iteration_bounds = array<i64: 1>, scalar_prefetch = 0 : i64, scratch_operands = 0 : i64, tpu.core_type = #tpu.core_type<tc>, window_params = [{transform_indices = @transform_0, window_bounds = array<i64: 8, 16>}, {pipeline_mode = #tpu.pipeline_mode<synchronous>, transform_indices = @transform_1, window_bounds = array<i64: 16, 32>}, {pipeline_mode = #tpu.pipeline_mode<synchronous>, transform_indices = @transform_2, window_bounds = array<i64: 32, 32>}, {pipeline_mode = #tpu.pipeline_mode<synchronous>, transform_indices = @transform_3, window_bounds = array<i64: 32, 32>}, {pipeline_mode = #tpu.pipeline_mode<synchronous>, transform_indices = @transform_4, window_bounds = array<i64: 32, 128>}, {pipeline_mode = #tpu.pipeline_mode<synchronous>, transform_indices = @transform_5, window_bounds = array<i64: 32, 128>}, {pipeline_mode = #tpu.pipeline_mode<synchronous>, transform_indices = @transform_6, window_bounds = array<i64: 1, 640>}, {transform_indices = @transform_7, window_bounds = array<i64: 8, 128>}, {transform_indices = @transform_8, window_bounds = array<i64: 8, 128>}]} {
    %c0 = arith.constant 0 : index
    %c0_0 = arith.constant 0 : index
    %0 = vector.load %arg1[%c0, %c0_0] : memref<8x16xf32, #tpu.memory_space<vmem>>, vector<8x16xf32>
    %c0_1 = arith.constant 0 : index
    %c0_2 = arith.constant 0 : index
    %1 = vector.load %arg2[%c0_1, %c0_2] : memref<16x32xf32, #tpu.memory_space<vmem>>, vector<16x32xf32>
    %cst = arith.constant dense<0.000000e+00> : vector<8x32xf32>
    %2 = tpu.matmul %0, %1, %cst {dimension_numbers = #tpu.dot_dimension_numbers<[1], [0], [0], [1], [0, 0, 1, 1], [], []>} : vector<8x16xf32>, vector<16x32xf32>, vector<8x32xf32> -> vector<8x32xf32>
    %c0_3 = arith.constant 0 : index
    %c0_4 = arith.constant 0 : index
    %3 = vector.load %arg7[%c0_3, %c0_4] : memref<1x640xf32, #tpu.memory_space<vmem>>, vector<1x32xf32>
    %4 = vector.broadcast %3 : vector<1x32xf32> to vector<8x32xf32>
    %5 = arith.addf %2, %4 : vector<8x32xf32>
    %6 = arith.negf %5 : vector<8x32xf32>
    %7 = math.exp %6 : vector<8x32xf32>
    %cst_5 = arith.constant 1.000000e+00 : f32
    %8 = vector.broadcast %cst_5 : f32 to vector<8x32xf32>
    %9 = arith.addf %8, %7 : vector<8x32xf32>
    %10 = arith.divf %8, %9 : vector<8x32xf32>
    %11 = arith.mulf %5, %10 : vector<8x32xf32>
    %c0_6 = arith.constant 0 : index
    %c0_7 = arith.constant 0 : index
    %12 = vector.load %arg3[%c0_6, %c0_7] : memref<32x32xf32, #tpu.memory_space<vmem>>, vector<32x32xf32>
    %cst_8 = arith.constant dense<0.000000e+00> : vector<8x32xf32>
    %13 = tpu.matmul %11, %12, %cst_8 {dimension_numbers = #tpu.dot_dimension_numbers<[1], [0], [0], [1], [0, 0, 1, 1], [], []>} : vector<8x32xf32>, vector<32x32xf32>, vector<8x32xf32> -> vector<8x32xf32>
    %c0_9 = arith.constant 0 : index
    %c128 = arith.constant 128 : index
    %14 = vector.load %arg7[%c0_9, %c128] : memref<1x640xf32, #tpu.memory_space<vmem>>, vector<1x32xf32>
    %15 = vector.broadcast %14 : vector<1x32xf32> to vector<8x32xf32>
    %16 = arith.addf %13, %15 : vector<8x32xf32>
    %17 = arith.negf %16 : vector<8x32xf32>
    %18 = math.exp %17 : vector<8x32xf32>
    %cst_10 = arith.constant 1.000000e+00 : f32
    %19 = vector.broadcast %cst_10 : f32 to vector<8x32xf32>
    %20 = arith.addf %19, %18 : vector<8x32xf32>
    %21 = arith.divf %19, %20 : vector<8x32xf32>
    %22 = arith.mulf %16, %21 : vector<8x32xf32>
    %c0_11 = arith.constant 0 : index
    %c0_12 = arith.constant 0 : index
    %23 = vector.load %arg4[%c0_11, %c0_12] : memref<32x32xf32, #tpu.memory_space<vmem>>, vector<32x32xf32>
    %cst_13 = arith.constant dense<0.000000e+00> : vector<8x32xf32>
    %24 = tpu.matmul %22, %23, %cst_13 {dimension_numbers = #tpu.dot_dimension_numbers<[1], [0], [0], [1], [0, 0, 1, 1], [], []>} : vector<8x32xf32>, vector<32x32xf32>, vector<8x32xf32> -> vector<8x32xf32>
    %c0_14 = arith.constant 0 : index
    %c256 = arith.constant 256 : index
    %25 = vector.load %arg7[%c0_14, %c256] : memref<1x640xf32, #tpu.memory_space<vmem>>, vector<1x32xf32>
    %26 = vector.broadcast %25 : vector<1x32xf32> to vector<8x32xf32>
    %27 = arith.addf %24, %26 : vector<8x32xf32>
    %28 = arith.negf %27 : vector<8x32xf32>
    %29 = math.exp %28 : vector<8x32xf32>
    %cst_15 = arith.constant 1.000000e+00 : f32
    %30 = vector.broadcast %cst_15 : f32 to vector<8x32xf32>
    %31 = arith.addf %30, %29 : vector<8x32xf32>
    %32 = arith.divf %30, %31 : vector<8x32xf32>
    %33 = arith.mulf %27, %32 : vector<8x32xf32>
    %cst_16 = arith.constant dense<0.000000e+00> : vector<8xf32>
    %34 = vector.multi_reduction <add>, %33, %cst_16 [1] : vector<8x32xf32> to vector<8xf32>
    %35 = vector.shape_cast %34 : vector<8xf32> to vector<8x1xf32>
    %cst_17 = arith.constant 3.200000e+01 : f32
    %36 = vector.broadcast %cst_17 : f32 to vector<8x1xf32>
    %37 = arith.divf %35, %36 : vector<8x1xf32>
    %38 = vector.broadcast %37 : vector<8x1xf32> to vector<8x32xf32>
    %39 = arith.subf %33, %38 : vector<8x32xf32>
    %40 = arith.mulf %39, %39 : vector<8x32xf32>
    %cst_18 = arith.constant dense<0.000000e+00> : vector<8xf32>
    %41 = vector.multi_reduction <add>, %40, %cst_18 [1] : vector<8x32xf32> to vector<8xf32>
    %42 = vector.shape_cast %41 : vector<8xf32> to vector<8x1xf32>
    %cst_19 = arith.constant 3.200000e+01 : f32
    %43 = vector.broadcast %cst_19 : f32 to vector<8x1xf32>
    %44 = arith.divf %42, %43 : vector<8x1xf32>
    %cst_20 = arith.constant 9.99999974E-6 : f32
    %45 = vector.broadcast %cst_20 : f32 to vector<8x1xf32>
    %46 = arith.addf %44, %45 : vector<8x1xf32>
    %47 = math.rsqrt %46 : vector<8x1xf32>
    %48 = vector.broadcast %47 : vector<8x1xf32> to vector<8x32xf32>
    %49 = arith.mulf %39, %48 : vector<8x32xf32>
    %c0_21 = arith.constant 0 : index
    %c0_22 = arith.constant 0 : index
    %50 = vector.load %arg5[%c0_21, %c0_22] : memref<32x128xf32, #tpu.memory_space<vmem>>, vector<32x128xf32>
    %cst_23 = arith.constant dense<0.000000e+00> : vector<8x128xf32>
    %51 = tpu.matmul %49, %50, %cst_23 {dimension_numbers = #tpu.dot_dimension_numbers<[1], [0], [0], [1], [0, 0, 1, 1], [], []>} : vector<8x32xf32>, vector<32x128xf32>, vector<8x128xf32> -> vector<8x128xf32>
    %c0_24 = arith.constant 0 : index
    %c384 = arith.constant 384 : index
    %52 = vector.load %arg7[%c0_24, %c384] : memref<1x640xf32, #tpu.memory_space<vmem>>, vector<1x128xf32>
    %53 = vector.broadcast %52 : vector<1x128xf32> to vector<8x128xf32>
    %54 = arith.addf %51, %53 : vector<8x128xf32>
    %55 = vector.extract_strided_slice %54 {offsets = [0, 0], sizes = [8, 32], strides = [1, 1]} : vector<8x128xf32> to vector<8x32xf32>
    %56 = arith.negf %55 : vector<8x32xf32>
    %57 = math.exp %56 : vector<8x32xf32>
    %cst_25 = arith.constant 1.000000e+00 : f32
    %58 = vector.broadcast %cst_25 : f32 to vector<8x32xf32>
    %59 = arith.addf %58, %57 : vector<8x32xf32>
    %60 = arith.divf %58, %59 : vector<8x32xf32>
    %61 = vector.extract_strided_slice %54 {offsets = [0, 32], sizes = [8, 32], strides = [1, 1]} : vector<8x128xf32> to vector<8x32xf32>
    %62 = math.tanh %61 : vector<8x32xf32>
    %63 = vector.extract_strided_slice %54 {offsets = [0, 64], sizes = [8, 32], strides = [1, 1]} : vector<8x128xf32> to vector<8x32xf32>
    %64 = arith.negf %63 : vector<8x32xf32>
    %65 = math.exp %64 : vector<8x32xf32>
    %cst_26 = arith.constant 1.000000e+00 : f32
    %66 = vector.broadcast %cst_26 : f32 to vector<8x32xf32>
    %67 = arith.addf %66, %65 : vector<8x32xf32>
    %68 = arith.divf %66, %67 : vector<8x32xf32>
    %69 = arith.mulf %60, %62 : vector<8x32xf32>
    %70 = math.tanh %69 : vector<8x32xf32>
    %71 = arith.mulf %68, %70 : vector<8x32xf32>
    %c0_27 = arith.constant 0 : index
    %c0_28 = arith.constant 0 : index
    %72 = vector.load %arg6[%c0_27, %c0_28] : memref<32x128xf32, #tpu.memory_space<vmem>>, vector<32x128xf32>
    %cst_29 = arith.constant dense<0.000000e+00> : vector<8x128xf32>
    %73 = tpu.matmul %71, %72, %cst_29 {dimension_numbers = #tpu.dot_dimension_numbers<[1], [0], [0], [1], [0, 0, 1, 1], [], []>} : vector<8x32xf32>, vector<32x128xf32>, vector<8x128xf32> -> vector<8x128xf32>
    %c0_30 = arith.constant 0 : index
    %c512 = arith.constant 512 : index
    %74 = vector.load %arg7[%c0_30, %c512] : memref<1x640xf32, #tpu.memory_space<vmem>>, vector<1x128xf32>
    %75 = vector.broadcast %74 : vector<1x128xf32> to vector<8x128xf32>
    %76 = arith.addf %73, %75 : vector<8x128xf32>
    %c0_31 = arith.constant 0 : index
    %c0_32 = arith.constant 0 : index
    %77 = vector.load %arg8[%c0_31, %c0_32] : memref<8x128xbf16, #tpu.memory_space<vmem>>, vector<8x128xbf16>
    %78 = arith.extf %77 : vector<8x128xbf16> to vector<8x128xf32>
    %79 = arith.addf %76, %78 : vector<8x128xf32>
    %cst_33 = arith.constant dense<0xFF800000> : vector<8xf32>
    %80 = vector.multi_reduction <maximumf>, %79, %cst_33 [1] : vector<8x128xf32> to vector<8xf32>
    %81 = vector.shape_cast %80 : vector<8xf32> to vector<8x1xf32>
    %82 = vector.broadcast %81 : vector<8x1xf32> to vector<8x128xf32>
    %83 = arith.subf %79, %82 : vector<8x128xf32>
    %84 = math.exp %83 : vector<8x128xf32>
    %cst_34 = arith.constant dense<0.000000e+00> : vector<8xf32>
    %85 = vector.multi_reduction <add>, %84, %cst_34 [1] : vector<8x128xf32> to vector<8xf32>
    %86 = vector.shape_cast %85 : vector<8xf32> to vector<8x1xf32>
    %87 = tpu.reciprocal %86 {approx = true} : vector<8x1xf32> -> vector<8x1xf32>
    %88 = arith.mulf %86, %87 : vector<8x1xf32>
    %cst_35 = arith.constant 2.000000e+00 : f32
    %89 = vector.broadcast %cst_35 : f32 to vector<8x1xf32>
    %90 = arith.subf %89, %88 : vector<8x1xf32>
    %91 = arith.mulf %87, %90 : vector<8x1xf32>
    %92 = vector.broadcast %91 : vector<8x1xf32> to vector<8x128xf32>
    %93 = arith.mulf %84, %92 : vector<8x128xf32>
    %c0_36 = arith.constant 0 : index
    %c0_37 = arith.constant 0 : index
    %94 = vector.load %arg9[%c0_36, %c0_37] : memref<8x128xf32, #tpu.memory_space<vmem>>, vector<8x128xf32>
    tpu.vector_store %arg9[%c0_36, %c0_37], %93 {strides = array<i32>} : memref<8x128xf32, #tpu.memory_space<vmem>>, vector<8x128xf32>,
    return
  }
  func.func @transform_0(%arg0: i32) -> (i32, i32) {
    %c0_i32 = arith.constant 0 : i32
    %c0_i32_0 = arith.constant 0 : i32
    return %arg0, %c0_i32 : i32, i32
  }
  func.func @transform_1(%arg0: i32) -> (i32, i32) {
    %c0_i32 = arith.constant 0 : i32
    %c0_i32_0 = arith.constant 0 : i32
    %c0_i32_1 = arith.constant 0 : i32
    return %c0_i32, %c0_i32_0 : i32, i32
  }
  func.func @transform_2(%arg0: i32) -> (i32, i32) {
    %c0_i32 = arith.constant 0 : i32
    %c0_i32_0 = arith.constant 0 : i32
    %c0_i32_1 = arith.constant 0 : i32
    return %c0_i32, %c0_i32_0 : i32, i32
  }
  func.func @transform_3(%arg0: i32) -> (i32, i32) {
    %c0_i32 = arith.constant 0 : i32
    %c0_i32_0 = arith.constant 0 : i32
    %c0_i32_1 = arith.constant 0 : i32
    return %c0_i32, %c0_i32_0 : i32, i32
  }
  func.func @transform_4(%arg0: i32) -> (i32, i32) {
    %c0_i32 = arith.constant 0 : i32
    %c0_i32_0 = arith.constant 0 : i32
    %c0_i32_1 = arith.constant 0 : i32
    return %c0_i32, %c0_i32_0 : i32, i32
  }
  func.func @transform_5(%arg0: i32) -> (i32, i32) {
    %c0_i32 = arith.constant 0 : i32
    %c0_i32_0 = arith.constant 0 : i32
    %c0_i32_1 = arith.constant 0 : i32
    return %c0_i32, %c0_i32_0 : i32, i32
  }
  func.func @transform_6(%arg0: i32) -> (i32, i32) {
    %c0_i32 = arith.constant 0 : i32
    %c0_i32_0 = arith.constant 0 : i32
    %c0_i32_1 = arith.constant 0 : i32
    return %c0_i32, %c0_i32_0 : i32, i32
  }
  func.func @transform_7(%arg0: i32) -> (i32, i32) {
    %c0_i32 = arith.constant 0 : i32
    %c0_i32_0 = arith.constant 0 : i32
    return %arg0, %c0_i32 : i32, i32
  }
  func.func @transform_8(%arg0: i32) -> (i32, i32) {
    %c0_i32 = arith.constant 0 : i32
    %c0_i32_0 = arith.constant 0 : i32
    return %arg0, %c0_i32 : i32, i32
  }
}

</mosaic_0001>

<llo_original>
// kernel: tpu_custom_call.1
$region0: #{tpu_custom_call.1}
  #allocation0 [shape = 'u32[]', space=smem, size = 0x4, offset = 0x4, fixed_abs, tag = 'smem constant byte address 0x4 - core index']
  #allocation1 [shape = 'u32[144,128]{1,0:T(1,128)}', space=vmem, size = 0x12000, scoped, tag = 'internal scratch']
  %s0 = inlined_call_operand.hbm [shape: f32[8,16], index: 0, kind: input, shape index: {}]
  %s1 = inlined_call_operand.hbm [shape: f32[16,32], index: 1, kind: input, shape index: {}]
  %s2 = inlined_call_operand.hbm [shape: f32[32,32], index: 2, kind: input, shape index: {}]
  %s3 = inlined_call_operand.hbm [shape: f32[32,32], index: 3, kind: input, shape index: {}]
  %s4 = inlined_call_operand.hbm [shape: f32[32,128], index: 4, kind: input, shape index: {}]
  %s5 = inlined_call_operand.hbm [shape: f32[32,128], index: 5, kind: input, shape index: {}]
  %s6 = inlined_call_operand.vmem [shape: f32[1,640], index: 6, kind: input, shape index: {}]
  %s7 = inlined_call_operand.vmem [shape: bf16[8,128], index: 7, kind: input, shape index: {}]
  %s8 = inlined_call_operand.hbm [shape: f32[8,128], index: 8, kind: output, shape index: {}]
  %s9 = sld [smem:[#allocation0]]
  $region66: #{tpu_custom_call.1} parent=0
    _
  %s11 = ssub.s32 1, %s9
  %s12 = scalar_select 0, %s11, %s9
  $region1: #{tpu_custom_call.1} parent=0
    #allocation2 [shape = 'u8[4096]{0}', space=vmem, size = 0x1000, scoped, tag = 'input window, operand 0, single buffered']
    #allocation3 [shape = 's32[1]{0}', space=sflag, size = 0x4, scoped, tag = 'scoped memory for tpu_custom_call.1']
    #allocation4 [shape = 's32[1]{0}', space=sflag, size = 0x4, scoped, tag = 'scoped memory for tpu_custom_call.1']
    #allocation5 [shape = 'u8[8192]{0}', space=vmem, size = 0x2000, scoped, tag = 'input window, operand 1, single buffered']
    #allocation6 [shape = 's32[1]{0}', space=sflag, size = 0x4, scoped, tag = 'scoped memory for tpu_custom_call.1']
    #allocation7 [shape = 'u8[16384]{0}', space=vmem, size = 0x4000, scoped, tag = 'input window, operand 2, single buffered']
    #allocation8 [shape = 'u8[16384]{0}', space=vmem, size = 0x4000, scoped, tag = 'input window, operand 3, single buffered']
    #allocation9 [shape = 's32[1]{0}', space=sflag, size = 0x4, scoped, tag = 'scoped memory for tpu_custom_call.1']
    #allocation10 [shape = 'u8[16384]{0}', space=vmem, size = 0x4000, scoped, tag = 'input window, operand 4, single buffered']
    #allocation11 [shape = 'u8[16384]{0}', space=vmem, size = 0x4000, scoped, tag = 'input window, operand 5, single buffered']
    #allocation12 [shape = 's32[1]{0}', space=sflag, size = 0x4, scoped, tag = 'scoped memory for tpu_custom_call.1']
    #allocation13 [shape = 'u8[4096]{0}', space=vmem, size = 0x1000, scoped, tag = 'output window, operand 0, single buffered']
    %13 = vsyncpa [#allocation3], 0
    %14 = vsyncpa [#allocation6], 0
    %15 = vsyncpa [#allocation9], 0
    %16 = vsyncpa [#allocation12], 0
    %17 = vsyncpa [#allocation4], 0
    // Predicated region
    $region2: #{tpu_custom_call.1} parent=1 // pred_check
      _
    $region3: #{tpu_custom_call.1} parent=1 // pred_check_branch
      %19 = sbr.rel (0) target = $region5
    $region4: #{tpu_custom_call.1} parent=1 // pred_region
      %s21 = ssub.s32 128, 128
      %22 = vsyncadd [#allocation3], %s21
      %s24 = sshll.u32 [#allocation2], 4
      %s25 = int_to_ptr.vmem [resolvable:$true] %s24
      %27 = dma.hbm_to_vmem [thread:$0]  %s0, 128, %s25, [#allocation3]
    $region5: #{tpu_custom_call.1} parent=1 // pred_fallthru
      _
    // Predicated region
    $region6: #{tpu_custom_call.1} parent=1 // pred_check
      _
    $region7: #{tpu_custom_call.1} parent=1 // pred_check_branch
      %29 = sbr.rel (0) target = $region9
    $region8: #{tpu_custom_call.1} parent=1 // pred_region
      %s31 = ssub.s32 256, 256
      %32 = vsyncadd [#allocation6], %s31
      %s33 = sshll.u32 [#allocation5], 4
      %s34 = int_to_ptr.vmem [resolvable:$true] %s33
      %39 = dma.hbm_to_vmem [thread:$0]  %s1, 256, %s34, [#allocation6], 128, 128, 8
    $region9: #{tpu_custom_call.1} parent=1 // pred_fallthru
      _
    // Predicated region
    $region10: #{tpu_custom_call.1} parent=1 // pred_check
      _
    $region11: #{tpu_custom_call.1} parent=1 // pred_check_branch
      %41 = sbr.rel (0) target = $region13
    $region12: #{tpu_custom_call.1} parent=1 // pred_region
      %s43 = ssub.s32 512, 512
      %44 = vsyncadd [#allocation6], %s43
      %s45 = sshll.u32 [#allocation7], 4
      %s46 = int_to_ptr.vmem [resolvable:$true] %s45
      %51 = dma.hbm_to_vmem [thread:$0]  %s2, 512, %s46, [#allocation6], 128, 128, 8
    $region13: #{tpu_custom_call.1} parent=1 // pred_fallthru
      _
    // Predicated region
    $region14: #{tpu_custom_call.1} parent=1 // pred_check
      _
    $region15: #{tpu_custom_call.1} parent=1 // pred_check_branch
      %53 = sbr.rel (0) target = $region17
    $region16: #{tpu_custom_call.1} parent=1 // pred_region
      %s55 = ssub.s32 512, 512
      %56 = vsyncadd [#allocation9], %s55
      %s57 = sshll.u32 [#allocation8], 4
      %s58 = int_to_ptr.vmem [resolvable:$true] %s57
      %63 = dma.hbm_to_vmem [thread:$0]  %s3, 512, %s58, [#allocation9], 128, 128, 8
    $region17: #{tpu_custom_call.1} parent=1 // pred_fallthru
      _
    // Predicated region
    $region18: #{tpu_custom_call.1} parent=1 // pred_check
      _
    $region19: #{tpu_custom_call.1} parent=1 // pred_check_branch
      %65 = sbr.rel (0) target = $region21
    $region20: #{tpu_custom_call.1} parent=1 // pred_region
      %s67 = ssub.s32 512, 512
      %68 = vsyncadd [#allocation9], %s67
      %s69 = sshll.u32 [#allocation10], 4
      %s70 = int_to_ptr.vmem [resolvable:$true] %s69
      %75 = dma.hbm_to_vmem [thread:$0]  %s4, 512, %s70, [#allocation9], 128, 128, 8
    $region21: #{tpu_custom_call.1} parent=1 // pred_fallthru
      _
    // Predicated region
    $region22: #{tpu_custom_call.1} parent=1 // pred_check
      _
    $region23: #{tpu_custom_call.1} parent=1 // pred_check_branch
      %77 = sbr.rel (0) target = $region25
    $region24: #{tpu_custom_call.1} parent=1 // pred_region
      %s79 = ssub.s32 512, 512
      %80 = vsyncadd [#allocation12], %s79
      %s81 = sshll.u32 [#allocation11], 4
      %s82 = int_to_ptr.vmem [resolvable:$true] %s81
      %87 = dma.hbm_to_vmem [thread:$0]  %s5, 512, %s82, [#allocation12], 128, 128, 8
    $region25: #{tpu_custom_call.1} parent=1 // pred_fallthru
      _
    // Predicated region
    $region26: #{tpu_custom_call.1} parent=1 // pred_check
      _
    $region27: #{tpu_custom_call.1} parent=1 // pred_check_branch
      %89 = sbr.rel (0) target = $region29
    $region28: #{tpu_custom_call.1} parent=1 // pred_region
      _
    $region29: #{tpu_custom_call.1} parent=1 // pred_fallthru
      _
    // Predicated region
    $region30: #{tpu_custom_call.1} parent=1 // pred_check
      _
    $region31: #{tpu_custom_call.1} parent=1 // pred_check_branch
      %91 = sbr.rel (0) target = $region33
    $region32: #{tpu_custom_call.1} parent=1 // pred_region
      _
    $region33: #{tpu_custom_call.1} parent=1 // pred_fallthru
      _
    // Predicated region
    $region34: #{tpu_custom_call.1} parent=1 // pred_check
      _
    $region35: #{tpu_custom_call.1} parent=1 // pred_check_branch
      %93 = sbr.rel (0) target = $region37
    $region36: #{tpu_custom_call.1} parent=1 // pred_region
      %94 = dma.done [#allocation3], 128
    $region37: #{tpu_custom_call.1} parent=1 // pred_fallthru
      _
    // Predicated region
    $region38: #{tpu_custom_call.1} parent=1 // pred_check
      _
    $region39: #{tpu_custom_call.1} parent=1 // pred_check_branch
      %96 = sbr.rel (0) target = $region41
    $region40: #{tpu_custom_call.1} parent=1 // pred_region
      %97 = dma.done [#allocation6], 256
    $region41: #{tpu_custom_call.1} parent=1 // pred_fallthru
      _
    // Predicated region
    $region42: #{tpu_custom_call.1} parent=1 // pred_check
      _
    $region43: #{tpu_custom_call.1} parent=1 // pred_check_branch
      %99 = sbr.rel (0) target = $region45
    $region44: #{tpu_custom_call.1} parent=1 // pred_region
      %100 = dma.done [#allocation6], 512
    $region45: #{tpu_custom_call.1} parent=1 // pred_fallthru
      _
    // Predicated region
    $region46: #{tpu_custom_call.1} parent=1 // pred_check
      _
    $region47: #{tpu_custom_call.1} parent=1 // pred_check_branch
      %102 = sbr.rel (0) target = $region49
    $region48: #{tpu_custom_call.1} parent=1 // pred_region
      %103 = dma.done [#allocation9], 512
    $region49: #{tpu_custom_call.1} parent=1 // pred_fallthru
      _
    // Predicated region
    $region50: #{tpu_custom_call.1} parent=1 // pred_check
      _
    $region51: #{tpu_custom_call.1} parent=1 // pred_check_branch
      %105 = sbr.rel (0) target = $region53
    $region52: #{tpu_custom_call.1} parent=1 // pred_region
      %106 = dma.done [#allocation9], 512
    $region53: #{tpu_custom_call.1} parent=1 // pred_fallthru
      _
    // Predicated region
    $region54: #{tpu_custom_call.1} parent=1 // pred_check
      _
    $region55: #{tpu_custom_call.1} parent=1 // pred_check_branch
      %108 = sbr.rel (0) target = $region57
    $region56: #{tpu_custom_call.1} parent=1 // pred_region
      %109 = dma.done [#allocation12], 512
    $region57: #{tpu_custom_call.1} parent=1 // pred_fallthru
      _
    %v110 = vld [vmem:[#allocation2] sm:$0xff]
    %v111 = vld [vmem:[#allocation5] sm:$0xff]
    %v112 = vld [vmem:[#allocation5 + $0x8] sm:$0xff]
    %v113 = vld [vmem:[%s6] sm:$0x1]
    %v115 = vlaneseq
    %v116 = vshrl.u32 %v115, 7
    %v117 = vsub.s32 0, %v116
    %v118 = vrot.slane %v113, %v117
    %vm120 = vcmask 130048
    %v122 = vsel %vm120, %v110, 0
    %124 = vmatprep.subr.mxu0 0.0
    %125 = vmatpush1.msra.mxu0 %v111
    %126 = vmatprep.subr.mxu0 0.0
    %127 = vmatpush1.msra.mxu0 %v112
    %128 = vmatprep.subr.mxu0 0.0
    %129 = vmatpush1.msra.mxu0 0.0
    %130 = vmatprep.subr.mxu0 0.0
    %131 = vmatpush1.msra.mxu0 0.0
    %132 = vmatprep.subr.mxu0 0.0
    %133 = vmatpush1.msra.mxu0 0.0
    %134 = vmatprep.subr.mxu0 0.0
    %135 = vmatpush1.msra.mxu0 0.0
    %136 = vmatprep.subr.mxu0 0.0
    %137 = vmatpush1.msra.mxu0 0.0
    %138 = vmatprep.subr.mxu0 0.0
    %139 = vmatpush1.msra.mxu0 0.0
    %140 = vmatprep.subr.mxu0 0.0
    %141 = vmatpush1.msra.mxu0 0.0
    %142 = vmatprep.subr.mxu0 0.0
    %143 = vmatpush1.msra.mxu0 0.0
    %144 = vmatprep.subr.mxu0 0.0
    %145 = vmatpush1.msra.mxu0 0.0
    %146 = vmatprep.subr.mxu0 0.0
    %147 = vmatpush1.msra.mxu0 0.0
    %148 = vmatprep.subr.mxu0 0.0
    %149 = vmatpush1.msra.mxu0 0.0
    %150 = vmatprep.subr.mxu0 0.0
    %151 = vmatpush1.msra.mxu0 0.0
    %152 = vmatprep.subr.mxu0 0.0
    %153 = vmatpush1.msra.mxu0 0.0
    %154 = vmatprep.subr.mxu0 0.0
    %155 = vmatpush1.msra.mxu0 0.0
    %156 = vmatprep.subr.mxu0 0.0
    %157 = vmatpush1.msra.mxu0 0.0
    %158 = vmatprep.subr.mxu0 0.0
    %159 = vmatpush1.msra.mxu0 0.0
    %160 = vmatprep.subr.mxu0 0.0
    %161 = vmatpush1.msra.mxu0 0.0
    %162 = vmatprep.subr.mxu0 0.0
    %163 = vmatpush1.msra.mxu0 0.0
    %164 = vmatprep.subr.mxu0 0.0
    %165 = vmatpush1.msra.mxu0 0.0
    %166 = vmatprep.subr.mxu0 0.0
    %167 = vmatpush1.msra.mxu0 0.0
    %168 = vmatprep.subr.mxu0 0.0
    %169 = vmatpush1.msra.mxu0 0.0
    %170 = vmatprep.subr.mxu0 0.0
    %171 = vmatpush1.msra.mxu0 0.0
    %172 = vmatprep.subr.mxu0 0.0
    %173 = vmatpush1.msra.mxu0 0.0
    %174 = vmatprep.subr.mxu0 0.0
    %175 = vmatpush1.msra.mxu0 0.0
    %176 = vmatprep.subr.mxu0 0.0
    %177 = vmatpush1.msra.mxu0 0.0
    %178 = vmatprep.subr.mxu0 0.0
    %179 = vmatpush1.msra.mxu0 0.0
    %180 = vmatprep.subr.mxu0 0.0
    %181 = vmatpush1.msra.mxu0 0.0
    %182 = vmatprep.subr.mxu0 0.0
    %183 = vmatpush1.msra.mxu0 0.0
    %184 = vmatprep.subr.mxu0 0.0
    %185 = vmatpush1.msra.mxu0 0.0
    %186 = vmatprep.subr.mxu0 0.0
    %187 = vmatpush1.msra.mxu0 0.0
    %188 = vmatprep.mubr.f32.mxu0 0.0
    %189 = vmatmul.mubr.f32.gmra.mrb[0].mxu0 %v122
    %v190 = vpop.f32.mrb[0].mxu0
    %v191 = vadd.f32 %v118, %v190
    %v192 = vpop.f32.mrb[0].mxu0
    %193 = vdwg.mxu0
    %v194 = vxor.u32 %v191, 2147483648
    %v195 = vmul.f32 %v194, 1.442695
    %v196 = vpow.pop %v195
    %v197 = vadd.f32 %v196, 1.0
    %v198 = vrcp.pop %v197
    %v199 = vmul.f32 1.0, %v198
    %v200 = vmul.f32 %v191, %v199
    %v201 = vld [vmem:[#allocation7] sm:$0xff]
    %v202 = vld [vmem:[#allocation7 + $0x8] sm:$0xff]
    %v203 = vld [vmem:[#allocation7 + $0x10] sm:$0xff]
    %v204 = vld [vmem:[#allocation7 + $0x18] sm:$0xff]
    %v205 = vld [vmem:[%s6 + $0x1] sm:$0x1]
    %v207 = vlaneseq
    %v208 = vshrl.u32 %v207, 7
    %v209 = vsub.s32 0, %v208
    %v210 = vrot.slane %v205, %v209
    %vm212 = vcmask 261120
    %v214 = vsel %vm212, %v200, 0
    %216 = vmatprep.subr.mxu0 0.0
    %217 = vmatpush1.msra.mxu0 %v201
    %218 = vmatprep.subr.mxu0 0.0
    %219 = vmatpush1.msra.mxu0 %v202
    %220 = vmatprep.subr.mxu0 0.0
    %221 = vmatpush1.msra.mxu0 %v203
    %222 = vmatprep.subr.mxu0 0.0
    %223 = vmatpush1.msra.mxu0 %v204
    %224 = vmatprep.subr.mxu0 0.0
    %225 = vmatpush1.msra.mxu0 0.0
    %226 = vmatprep.subr.mxu0 0.0
    %227 = vmatpush1.msra.mxu0 0.0
    %228 = vmatprep.subr.mxu0 0.0
    %229 = vmatpush1.msra.mxu0 0.0
    %230 = vmatprep.subr.mxu0 0.0
    %231 = vmatpush1.msra.mxu0 0.0
    %232 = vmatprep.subr.mxu0 0.0
    %233 = vmatpush1.msra.mxu0 0.0
    %234 = vmatprep.subr.mxu0 0.0
    %235 = vmatpush1.msra.mxu0 0.0
    %236 = vmatprep.subr.mxu0 0.0
    %237 = vmatpush1.msra.mxu0 0.0
    %238 = vmatprep.subr.mxu0 0.0
    %239 = vmatpush1.msra.mxu0 0.0
    %240 = vmatprep.subr.mxu0 0.0
    %241 = vmatpush1.msra.mxu0 0.0
    %242 = vmatprep.subr.mxu0 0.0
    %243 = vmatpush1.msra.mxu0 0.0
    %244 = vmatprep.subr.mxu0 0.0
    %245 = vmatpush1.msra.mxu0 0.0
    %246 = vmatprep.subr.mxu0 0.0
    %247 = vmatpush1.msra.mxu0 0.0
    %248 = vmatprep.subr.mxu0 0.0
    %249 = vmatpush1.msra.mxu0 0.0
    %250 = vmatprep.subr.mxu0 0.0
    %251 = vmatpush1.msra.mxu0 0.0
    %252 = vmatprep.subr.mxu0 0.0
    %253 = vmatpush1.msra.mxu0 0.0
    %254 = vmatprep.subr.mxu0 0.0
    %255 = vmatpush1.msra.mxu0 0.0
    %256 = vmatprep.subr.mxu0 0.0
    %257 = vmatpush1.msra.mxu0 0.0
    %258 = vmatprep.subr.mxu0 0.0
    %259 = vmatpush1.msra.mxu0 0.0
    %260 = vmatprep.subr.mxu0 0.0
    %261 = vmatpush1.msra.mxu0 0.0
    %262 = vmatprep.subr.mxu0 0.0
    %263 = vmatpush1.msra.mxu0 0.0
    %264 = vmatprep.subr.mxu0 0.0
    %265 = vmatpush1.msra.mxu0 0.0
    %266 = vmatprep.subr.mxu0 0.0
    %267 = vmatpush1.msra.mxu0 0.0
    %268 = vmatprep.subr.mxu0 0.0
    %269 = vmatpush1.msra.mxu0 0.0
    %270 = vmatprep.subr.mxu0 0.0
    %271 = vmatpush1.msra.mxu0 0.0
    %272 = vmatprep.subr.mxu0 0.0
    %273 = vmatpush1.msra.mxu0 0.0
    %274 = vmatprep.subr.mxu0 0.0
    %275 = vmatpush1.msra.mxu0 0.0
    %276 = vmatprep.subr.mxu0 0.0
    %277 = vmatpush1.msra.mxu0 0.0
    %278 = vmatprep.subr.mxu0 0.0
    %279 = vmatpush1.msra.mxu0 0.0
    %280 = vmatprep.mubr.f32.mxu0 0.0
    %281 = vmatmul.mubr.f32.gmra.mrb[0].mxu0 %v214
    %v282 = vpop.f32.mrb[0].mxu0
    %v283 = vadd.f32 %v210, %v282
    %v284 = vpop.f32.mrb[0].mxu0
    %285 = vdwg.mxu0
    %v286 = vxor.u32 %v283, 2147483648
    %v287 = vmul.f32 %v286, 1.442695
    %v288 = vpow.pop %v287
    %v289 = vadd.f32 %v288, 1.0
    %v290 = vrcp.pop %v289
    %v291 = vmul.f32 1.0, %v290
    %v292 = vmul.f32 %v283, %v291
    %v293 = vld [vmem:[#allocation8] sm:$0xff]
    %v294 = vld [vmem:[#allocation8 + $0x8] sm:$0xff]
    %v295 = vld [vmem:[#allocation8 + $0x10] sm:$0xff]
    %v296 = vld [vmem:[#allocation8 + $0x18] sm:$0xff]
    %v297 = vld [vmem:[%s6 + $0x2] sm:$0x1]
    %v299 = vlaneseq
    %v300 = vshrl.u32 %v299, 7
    %v301 = vsub.s32 0, %v300
    %v302 = vrot.slane %v297, %v301
    %v305 = vsel %vm212, %v292, 0
    %307 = vmatprep.subr.mxu0 0.0
    %308 = vmatpush1.msra.mxu0 %v293
    %309 = vmatprep.subr.mxu0 0.0
    %310 = vmatpush1.msra.mxu0 %v294
    %311 = vmatprep.subr.mxu0 0.0
    %312 = vmatpush1.msra.mxu0 %v295
    %313 = vmatprep.subr.mxu0 0.0
    %314 = vmatpush1.msra.mxu0 %v296
    %315 = vmatprep.subr.mxu0 0.0
    %316 = vmatpush1.msra.mxu0 0.0
    %317 = vmatprep.subr.mxu0 0.0
    %318 = vmatpush1.msra.mxu0 0.0
    %319 = vmatprep.subr.mxu0 0.0
    %320 = vmatpush1.msra.mxu0 0.0
    %321 = vmatprep.subr.mxu0 0.0
    %322 = vmatpush1.msra.mxu0 0.0
    %323 = vmatprep.subr.mxu0 0.0
    %324 = vmatpush1.msra.mxu0 0.0
    %325 = vmatprep.subr.mxu0 0.0
    %326 = vmatpush1.msra.mxu0 0.0
    %327 = vmatprep.subr.mxu0 0.0
    %328 = vmatpush1.msra.mxu0 0.0
    %329 = vmatprep.subr.mxu0 0.0
    %330 = vmatpush1.msra.mxu0 0.0
    %331 = vmatprep.subr.mxu0 0.0
    %332 = vmatpush1.msra.mxu0 0.0
    %333 = vmatprep.subr.mxu0 0.0
    %334 = vmatpush1.msra.mxu0 0.0
    %335 = vmatprep.subr.mxu0 0.0
    %336 = vmatpush1.msra.mxu0 0.0
    %337 = vmatprep.subr.mxu0 0.0
    %338 = vmatpush1.msra.mxu0 0.0
    %339 = vmatprep.subr.mxu0 0.0
    %340 = vmatpush1.msra.mxu0 0.0
    %341 = vmatprep.subr.mxu0 0.0
    %342 = vmatpush1.msra.mxu0 0.0
    %343 = vmatprep.subr.mxu0 0.0
    %344 = vmatpush1.msra.mxu0 0.0
    %345 = vmatprep.subr.mxu0 0.0
    %346 = vmatpush1.msra.mxu0 0.0
    %347 = vmatprep.subr.mxu0 0.0
    %348 = vmatpush1.msra.mxu0 0.0
    %349 = vmatprep.subr.mxu0 0.0
    %350 = vmatpush1.msra.mxu0 0.0
    %351 = vmatprep.subr.mxu0 0.0
    %352 = vmatpush1.msra.mxu0 0.0
    %353 = vmatprep.subr.mxu0 0.0
    %354 = vmatpush1.msra.mxu0 0.0
    %355 = vmatprep.subr.mxu0 0.0
    %356 = vmatpush1.msra.mxu0 0.0
    %357 = vmatprep.subr.mxu0 0.0
    %358 = vmatpush1.msra.mxu0 0.0
    %359 = vmatprep.subr.mxu0 0.0
    %360 = vmatpush1.msra.mxu0 0.0
    %361 = vmatprep.subr.mxu0 0.0
    %362 = vmatpush1.msra.mxu0 0.0
    %363 = vmatprep.subr.mxu0 0.0
    %364 = vmatpush1.msra.mxu0 0.0
    %365 = vmatprep.subr.mxu0 0.0
    %366 = vmatpush1.msra.mxu0 0.0
    %367 = vmatprep.subr.mxu0 0.0
    %368 = vmatpush1.msra.mxu0 0.0
    %369 = vmatprep.subr.mxu0 0.0
    %370 = vmatpush1.msra.mxu0 0.0
    %371 = vmatprep.mubr.f32.mxu0 0.0
    %372 = vmatmul.mubr.f32.gmra.mrb[0].mxu0 %v305
    %v373 = vpop.f32.mrb[0].mxu0
    %v374 = vadd.f32 %v302, %v373
    %v375 = vpop.f32.mrb[0].mxu0
    %376 = vdwg.mxu0
    %v377 = vxor.u32 %v374, 2147483648
    %v378 = vmul.f32 %v377, 1.442695
    %v379 = vpow.pop %v378
    %v380 = vadd.f32 %v379, 1.0
    %v381 = vrcp.pop %v380
    %v382 = vmul.f32 1.0, %v381
    %v383 = vmul.f32 %v374, %v382
    %v384 = vsel %vm212, %v383, 0.0
    %385 = vadd.xlane.f32.xlu0 %v384
    %v386 = vpop.xlane.xlu0 %385
    %v387 = vrcp.pop 32.0
    %v388 = vmul.f32 %v386, %v387
    %v389 = vsub.f32 %v383, %v388
    %v390 = vmul.f32 %v389, %v389
    %v391 = vsel %vm212, %v390, 0.0
    %392 = vadd.xlane.f32.xlu0 %v391
    %v393 = vpop.xlane.xlu0 %392
    %v394 = vmul.f32 %v393, %v387
    %v395 = vadd.f32 %v394, 1e-05
    %v396 = vrsqrt.pop %v395
    %v397 = vmul.f32 %v389, %v396
    %v398 = vld [vmem:[#allocation10] sm:$0xff]
    %v399 = vld [vmem:[#allocation10 + $0x8] sm:$0xff]
    %v400 = vld [vmem:[#allocation10 + $0x10] sm:$0xff]
    %v401 = vld [vmem:[#allocation10 + $0x18] sm:$0xff]
    %v402 = vld [vmem:[%s6 + $0x3] sm:$0x1]
    %v404 = vlaneseq
    %v405 = vshrl.u32 %v404, 7
    %v406 = vsub.s32 0, %v405
    %v407 = vrot.slane %v402, %v406
    %v410 = vsel %vm212, %v397, 0
    %412 = vmatprep.subr.mxu0 0.0
    %413 = vmatpush1.msra.mxu0 %v398
    %414 = vmatprep.subr.mxu0 0.0
    %415 = vmatpush1.msra.mxu0 %v399
    %416 = vmatprep.subr.mxu0 0.0
    %417 = vmatpush1.msra.mxu0 %v400
    %418 = vmatprep.subr.mxu0 0.0
    %419 = vmatpush1.msra.mxu0 %v401
    %420 = vmatprep.subr.mxu0 0.0
    %421 = vmatpush1.msra.mxu0 0.0
    %422 = vmatprep.subr.mxu0 0.0
    %423 = vmatpush1.msra.mxu0 0.0
    %424 = vmatprep.subr.mxu0 0.0
    %425 = vmatpush1.msra.mxu0 0.0
    %426 = vmatprep.subr.mxu0 0.0
    %427 = vmatpush1.msra.mxu0 0.0
    %428 = vmatprep.subr.mxu0 0.0
    %429 = vmatpush1.msra.mxu0 0.0
    %430 = vmatprep.subr.mxu0 0.0
    %431 = vmatpush1.msra.mxu0 0.0
    %432 = vmatprep.subr.mxu0 0.0
    %433 = vmatpush1.msra.mxu0 0.0
    %434 = vmatprep.subr.mxu0 0.0
    %435 = vmatpush1.msra.mxu0 0.0
    %436 = vmatprep.subr.mxu0 0.0
    %437 = vmatpush1.msra.mxu0 0.0
    %438 = vmatprep.subr.mxu0 0.0
    %439 = vmatpush1.msra.mxu0 0.0
    %440 = vmatprep.subr.mxu0 0.0
    %441 = vmatpush1.msra.mxu0 0.0
    %442 = vmatprep.subr.mxu0 0.0
    %443 = vmatpush1.msra.mxu0 0.0
    %444 = vmatprep.subr.mxu0 0.0
    %445 = vmatpush1.msra.mxu0 0.0
    %446 = vmatprep.subr.mxu0 0.0
    %447 = vmatpush1.msra.mxu0 0.0
    %448 = vmatprep.subr.mxu0 0.0
    %449 = vmatpush1.msra.mxu0 0.0
    %450 = vmatprep.subr.mxu0 0.0
    %451 = vmatpush1.msra.mxu0 0.0
    %452 = vmatprep.subr.mxu0 0.0
    %453 = vmatpush1.msra.mxu0 0.0
    %454 = vmatprep.subr.mxu0 0.0
    %455 = vmatpush1.msra.mxu0 0.0
    %456 = vmatprep.subr.mxu0 0.0
    %457 = vmatpush1.msra.mxu0 0.0
    %458 = vmatprep.subr.mxu0 0.0
    %459 = vmatpush1.msra.mxu0 0.0
    %460 = vmatprep.subr.mxu0 0.0
    %461 = vmatpush1.msra.mxu0 0.0
    %462 = vmatprep.subr.mxu0 0.0
    %463 = vmatpush1.msra.mxu0 0.0
    %464 = vmatprep.subr.mxu0 0.0
    %465 = vmatpush1.msra.mxu0 0.0
    %466 = vmatprep.subr.mxu0 0.0
    %467 = vmatpush1.msra.mxu0 0.0
    %468 = vmatprep.subr.mxu0 0.0
    %469 = vmatpush1.msra.mxu0 0.0
    %470 = vmatprep.subr.mxu0 0.0
    %471 = vmatpush1.msra.mxu0 0.0
    %472 = vmatprep.subr.mxu0 0.0
    %473 = vmatpush1.msra.mxu0 0.0
    %474 = vmatprep.subr.mxu0 0.0
    %475 = vmatpush1.msra.mxu0 0.0
    %476 = vmatprep.mubr.f32.mxu0 0.0
    %477 = vmatmul.mubr.f32.gmra.mrb[0].mxu0 %v410
    %v478 = vpop.f32.mrb[0].mxu0
    %v479 = vadd.f32 %v407, %v478
    %v480 = vpop.f32.mrb[0].mxu0
    %481 = vdwg.mxu0
    %v482 = vxor.u32 %v479, 2147483648
    %v483 = vmul.f32 %v482, 1.442695
    %v484 = vpow.pop %v483
    %v485 = vadd.f32 %v484, 1.0
    %v486 = vrcp.pop %v485
    %v487 = vmul.f32 1.0, %v486
    %v488 = vtanh.pop %v479
    %490 = vrot.lane.b32.xlu0 %v488, 96
    %v491 = vpop.permute.xlu0 %490
    %v493 = vmul.f32 %v487, %v491
    %v494 = vtanh.pop %v493
    %496 = vrot.lane.b32.xlu0 %v494, 64
    %v497 = vpop.permute.xlu0 %496
    %v499 = vmul.f32 %v487, %v497
    %v500 = vld [vmem:[#allocation11] sm:$0xff]
    %v501 = vld [vmem:[#allocation11 + $0x8] sm:$0xff]
    %v502 = vld [vmem:[#allocation11 + $0x10] sm:$0xff]
    %v503 = vld [vmem:[#allocation11 + $0x18] sm:$0xff]
    %v504 = vld [vmem:[%s6 + $0x4] sm:$0x1]
    %v506 = vlaneseq
    %v507 = vshrl.u32 %v506, 7
    %v508 = vsub.s32 0, %v507
    %v509 = vrot.slane %v504, %v508
    %512 = vrot.lane.b32.xlu0 %v499, 64
    %v513 = vpop.permute.xlu0 %512
    %v514 = vsel %vm212, %v513, 0
    %516 = vmatprep.subr.mxu0 0.0
    %517 = vmatpush1.msra.mxu0 %v500
    %518 = vmatprep.subr.mxu0 0.0
    %519 = vmatpush1.msra.mxu0 %v501
    %520 = vmatprep.subr.mxu0 0.0
    %521 = vmatpush1.msra.mxu0 %v502
    %522 = vmatprep.subr.mxu0 0.0
    %523 = vmatpush1.msra.mxu0 %v503
    %524 = vmatprep.subr.mxu0 0.0
    %525 = vmatpush1.msra.mxu0 0.0
    %526 = vmatprep.subr.mxu0 0.0
    %527 = vmatpush1.msra.mxu0 0.0
    %528 = vmatprep.subr.mxu0 0.0
    %529 = vmatpush1.msra.mxu0 0.0
    %530 = vmatprep.subr.mxu0 0.0
    %531 = vmatpush1.msra.mxu0 0.0
    %532 = vmatprep.subr.mxu0 0.0
    %533 = vmatpush1.msra.mxu0 0.0
    %534 = vmatprep.subr.mxu0 0.0
    %535 = vmatpush1.msra.mxu0 0.0
    %536 = vmatprep.subr.mxu0 0.0
    %537 = vmatpush1.msra.mxu0 0.0
    %538 = vmatprep.subr.mxu0 0.0
    %539 = vmatpush1.msra.mxu0 0.0
    %540 = vmatprep.subr.mxu0 0.0
    %541 = vmatpush1.msra.mxu0 0.0
    %542 = vmatprep.subr.mxu0 0.0
    %543 = vmatpush1.msra.mxu0 0.0
    %544 = vmatprep.subr.mxu0 0.0
    %545 = vmatpush1.msra.mxu0 0.0
    %546 = vmatprep.subr.mxu0 0.0
    %547 = vmatpush1.msra.mxu0 0.0
    %548 = vmatprep.subr.mxu0 0.0
    %549 = vmatpush1.msra.mxu0 0.0
    %550 = vmatprep.subr.mxu0 0.0
    %551 = vmatpush1.msra.mxu0 0.0
    %552 = vmatprep.subr.mxu0 0.0
    %553 = vmatpush1.msra.mxu0 0.0
    %554 = vmatprep.subr.mxu0 0.0
    %555 = vmatpush1.msra.mxu0 0.0
    %556 = vmatprep.subr.mxu0 0.0
    %557 = vmatpush1.msra.mxu0 0.0
    %558 = vmatprep.subr.mxu0 0.0
    %559 = vmatpush1.msra.mxu0 0.0
    %560 = vmatprep.subr.mxu0 0.0
    %561 = vmatpush1.msra.mxu0 0.0
    %562 = vmatprep.subr.mxu0 0.0
    %563 = vmatpush1.msra.mxu0 0.0
    %564 = vmatprep.subr.mxu0 0.0
    %565 = vmatpush1.msra.mxu0 0.0
    %566 = vmatprep.subr.mxu0 0.0
    %567 = vmatpush1.msra.mxu0 0.0
    %568 = vmatprep.subr.mxu0 0.0
    %569 = vmatpush1.msra.mxu0 0.0
    %570 = vmatprep.subr.mxu0 0.0
    %571 = vmatpush1.msra.mxu0 0.0
    %572 = vmatprep.subr.mxu0 0.0
    %573 = vmatpush1.msra.mxu0 0.0
    %574 = vmatprep.subr.mxu0 0.0
    %575 = vmatpush1.msra.mxu0 0.0
    %576 = vmatprep.subr.mxu0 0.0
    %577 = vmatpush1.msra.mxu0 0.0
    %578 = vmatprep.subr.mxu0 0.0
    %579 = vmatpush1.msra.mxu0 0.0
    %580 = vmatprep.mubr.f32.mxu0 0.0
    %581 = vmatmul.mubr.f32.gmra.mrb[0].mxu0 %v514
    %v582 = vpop.f32.mrb[0].mxu0
    %v583 = vadd.f32 %v509, %v582
    %v584 = vpop.f32.mrb[0].mxu0
    %585 = vdwg.mxu0
    %v586 = vld [vmem:[%s7] sm:$0xf]
    %v587 = vunpack.c.l.bf16 %v586
    %v588 = vadd.f32 %v583, %v587
    %589 = vmax.xlane.f32.xlu0 %v588
    %v590 = vpop.xlane.xlu0 %589
    %v591 = vsub.f32 %v588, %v590
    %v592 = vmul.f32 %v591, 1.442695
    %v593 = vpow.pop %v592
    %594 = vadd.xlane.f32.xlu0 %v593
    %v595 = vpop.xlane.xlu0 %594
    %v596 = vrcp.pop %v595
    %v597 = vmul.f32 %v595, %v596
    %v598 = vsub.f32 2.0, %v597
    %v599 = vmul.f32 %v596, %v598
    %v600 = vmul.f32 %v593, %v599
    %601 = vst [vmem:[#allocation13] sm:$0xff] %v600
    // Predicated region
    $region58: #{tpu_custom_call.1} parent=1 // pred_check
      _
    $region59: #{tpu_custom_call.1} parent=1 // pred_check_branch
      %603 = sbr.rel (0) target = $region61
    $region60: #{tpu_custom_call.1} parent=1 // pred_region
      %s605 = ssub.s32 128, 128
      %606 = vsyncadd [#allocation4], %s605
      %s608 = sshll.u32 [#allocation13], 4
      %s609 = int_to_ptr.vmem [resolvable:$true] %s608
      %611 = dma.vmem_to_hbm [thread:$0]  %s609, 128, %s8, [#allocation4]
    $region61: #{tpu_custom_call.1} parent=1 // pred_fallthru
      _
    // Predicated region
    $region62: #{tpu_custom_call.1} parent=1 // pred_check
      _
    $region63: #{tpu_custom_call.1} parent=1 // pred_check_branch
      %613 = sbr.rel (0) target = $region65
    $region64: #{tpu_custom_call.1} parent=1 // pred_region
      %614 = dma.done [#allocation4], 128
    $region65: #{tpu_custom_call.1} parent=1 // pred_fallthru
      _
    %615 = vsyncpa [#allocation3], 1
    %616 = vsyncpa [#allocation6], 1
    %617 = vsyncpa [#allocation9], 1
    %618 = vsyncpa [#allocation12], 1
    %619 = vsyncpa [#allocation4], 1

// kernel: tpu_custom_call.1
$region0: #{tpu_custom_call.1}
  #allocation0 [shape = 'u32[]', space=smem, size = 0x4, offset = 0x4, fixed_abs, tag = 'smem constant byte address 0x4 - core index']
  #allocation1 [shape = 'u32[144,128]{1,0:T(1,128)}', space=vmem, size = 0x12000, scoped, tag = 'internal scratch']
  %s0 = inlined_call_operand.hbm [shape: f32[8,16], index: 0, kind: input, shape index: {}]
  %s1 = inlined_call_operand.hbm [shape: f32[16,32], index: 1, kind: input, shape index: {}]
  %s2 = inlined_call_operand.hbm [shape: f32[32,32], index: 2, kind: input, shape index: {}]
  %s3 = inlined_call_operand.hbm [shape: f32[32,32], index: 3, kind: input, shape index: {}]
  %s4 = inlined_call_operand.hbm [shape: f32[32,128], index: 4, kind: input, shape index: {}]
  %s5 = inlined_call_operand.hbm [shape: f32[32,128], index: 5, kind: input, shape index: {}]
  %s6 = inlined_call_operand.vmem [shape: f32[1,640], index: 6, kind: input, shape index: {}]
  %s7 = inlined_call_operand.vmem [shape: bf16[8,128], index: 7, kind: input, shape index: {}]
  %s8 = inlined_call_operand.hbm [shape: f32[8,128], index: 8, kind: output, shape index: {}]
  %s9 = sld [smem:[#allocation0]]
  $region66: #{tpu_custom_call.1} parent=0
    _
  %s11 = ssub.s32 1, %s9
  %s12 = scalar_select 0, %s11, %s9
  $region1: #{tpu_custom_call.1} parent=0
    #allocation2 [shape = 'u8[4096]{0}', space=vmem, size = 0x1000, scoped, tag = 'input window, operand 0, single buffered']
    #allocation3 [shape = 's32[1]{0}', space=sflag, size = 0x4, scoped, tag = 'scoped memory for tpu_custom_call.1']
    #allocation4 [shape = 's32[1]{0}', space=sflag, size = 0x4, scoped, tag = 'scoped memory for tpu_custom_call.1']
    #allocation5 [shape = 'u8[8192]{0}', space=vmem, size = 0x2000, scoped, tag = 'input window, operand 1, single buffered']
    #allocation6 [shape = 's32[1]{0}', space=sflag, size = 0x4, scoped, tag = 'scoped memory for tpu_custom_call.1']
    #allocation7 [shape = 'u8[16384]{0}', space=vmem, size = 0x4000, scoped, tag = 'input window, operand 2, single buffered']
    #allocation8 [shape = 'u8[16384]{0}', space=vmem, size = 0x4000, scoped, tag = 'input window, operand 3, single buffered']
    #allocation9 [shape = 's32[1]{0}', space=sflag, size = 0x4, scoped, tag = 'scoped memory for tpu_custom_call.1']
    #allocation10 [shape = 'u8[16384]{0}', space=vmem, size = 0x4000, scoped, tag = 'input window, operand 4, single buffered']
    #allocation11 [shape = 'u8[16384]{0}', space=vmem, size = 0x4000, scoped, tag = 'input window, operand 5, single buffered']
    #allocation12 [shape = 's32[1]{0}', space=sflag, size = 0x4, scoped, tag = 'scoped memory for tpu_custom_call.1']
    #allocation13 [shape = 'u8[4096]{0}', space=vmem, size = 0x1000, scoped, tag = 'output window, operand 0, single buffered']
    %13 = vsyncpa [#allocation3], 0
    %14 = vsyncpa [#allocation6], 0
    %15 = vsyncpa [#allocation9], 0
    %16 = vsyncpa [#allocation12], 0
    %17 = vsyncpa [#allocation4], 0
    // Predicated region
    $region2: #{tpu_custom_call.1} parent=1 // pred_check
      _
    $region3: #{tpu_custom_call.1} parent=1 // pred_check_branch
      %19 = sbr.rel (0) target = $region5
    $region4: #{tpu_custom_call.1} parent=1 // pred_region
      %s21 = ssub.s32 128, 128
      %22 = vsyncadd [#allocation3], %s21
      %s24 = sshll.u32 [#allocation2], 4
      %s25 = int_to_ptr.vmem [resolvable:$true] %s24
      %27 = dma.hbm_to_vmem [thread:$0]  %s0, 128, %s25, [#allocation3]
    $region5: #{tpu_custom_call.1} parent=1 // pred_fallthru
      _
    // Predicated region
    $region6: #{tpu_custom_call.1} parent=1 // pred_check
      _
    $region7: #{tpu_custom_call.1} parent=1 // pred_check_branch
      %29 = sbr.rel (0) target = $region9
    $region8: #{tpu_custom_call.1} parent=1 // pred_region
      %s31 = ssub.s32 256, 256
      %32 = vsyncadd [#allocation6], %s31
      %s33 = sshll.u32 [#allocation5], 4
      %s34 = int_to_ptr.vmem [resolvable:$true] %s33
      %39 = dma.hbm_to_vmem [thread:$0]  %s1, 256, %s34, [#allocation6], 128, 128, 8
    $region9: #{tpu_custom_call.1} parent=1 // pred_fallthru
      _
    // Predicated region
    $region10: #{tpu_custom_call.1} parent=1 // pred_check
      _
    $region11: #{tpu_custom_call.1} parent=1 // pred_check_branch
      %41 = sbr.rel (0) target = $region13
    $region12: #{tpu_custom_call.1} parent=1 // pred_region
      %s43 = ssub.s32 512, 512
      %44 = vsyncadd [#allocation6], %s43
      %s45 = sshll.u32 [#allocation7], 4
      %s46 = int_to_ptr.vmem [resolvable:$true] %s45
      %51 = dma.hbm_to_vmem [thread:$0]  %s2, 512, %s46, [#allocation6], 128, 128, 8
    $region13: #{tpu_custom_call.1} parent=1 // pred_fallthru
      _
    // Predicated region
    $region14: #{tpu_custom_call.1} parent=1 // pred_check
      _
    $region15: #{tpu_custom_call.1} parent=1 // pred_check_branch
      %53 = sbr.rel (0) target = $region17
    $region16: #{tpu_custom_call.1} parent=1 // pred_region
      %s55 = ssub.s32 512, 512
      %56 = vsyncadd [#allocation9], %s55
      %s57 = sshll.u32 [#allocation8], 4
      %s58 = int_to_ptr.vmem [resolvable:$true] %s57
      %63 = dma.hbm_to_vmem [thread:$0]  %s3, 512, %s58, [#allocation9], 128, 128, 8
    $region17: #{tpu_custom_call.1} parent=1 // pred_fallthru
      _
    // Predicated region
    $region18: #{tpu_custom_call.1} parent=1 // pred_check
      _
    $region19: #{tpu_custom_call.1} parent=1 // pred_check_branch
      %65 = sbr.rel (0) target = $region21
    $region20: #{tpu_custom_call.1} parent=1 // pred_region
      %s67 = ssub.s32 512, 512
      %68 = vsyncadd [#allocation9], %s67
      %s69 = sshll.u32 [#allocation10], 4
      %s70 = int_to_ptr.vmem [resolvable:$true] %s69
      %75 = dma.hbm_to_vmem [thread:$0]  %s4, 512, %s70, [#allocation9], 128, 128, 8
    $region21: #{tpu_custom_call.1} parent=1 // pred_fallthru
      _
    // Predicated region
    $region22: #{tpu_custom_call.1} parent=1 // pred_check
      _
    $region23: #{tpu_custom_call.1} parent=1 // pred_check_branch
      %77 = sbr.rel (0) target = $region25
    $region24: #{tpu_custom_call.1} parent=1 // pred_region
      %s79 = ssub.s32 512, 512
      %80 = vsyncadd [#allocation12], %s79
      %s81 = sshll.u32 [#allocation11], 4
      %s82 = int_to_ptr.vmem [resolvable:$true] %s81
      %87 = dma.hbm_to_vmem [thread:$0]  %s5, 512, %s82, [#allocation12], 128, 128, 8
    $region25: #{tpu_custom_call.1} parent=1 // pred_fallthru
      _
    // Predicated region
    $region26: #{tpu_custom_call.1} parent=1 // pred_check
      _
    $region27: #{tpu_custom_call.1} parent=1 // pred_check_branch
      %89 = sbr.rel (0) target = $region29
    $region28: #{tpu_custom_call.1} parent=1 // pred_region
      _
    $region29: #{tpu_custom_call.1} parent=1 // pred_fallthru
      _
    // Predicated region
    $region30: #{tpu_custom_call.1} parent=1 // pred_check
      _
    $region31: #{tpu_custom_call.1} parent=1 // pred_check_branch
      %91 = sbr.rel (0) target = $region33
    $region32: #{tpu_custom_call.1} parent=1 // pred_region
      _
    $region33: #{tpu_custom_call.1} parent=1 // pred_fallthru
      _
    // Predicated region
    $region34: #{tpu_custom_call.1} parent=1 // pred_check
      _
    $region35: #{tpu_custom_call.1} parent=1 // pred_check_branch
      %93 = sbr.rel (0) target = $region37
    $region36: #{tpu_custom_call.1} parent=1 // pred_region
      %94 = dma.done [#allocation3], 128
    $region37: #{tpu_custom_call.1} parent=1 // pred_fallthru
      _
    // Predicated region
    $region38: #{tpu_custom_call.1} parent=1 // pred_check
      _
    $region39: #{tpu_custom_call.1} parent=1 // pred_check_branch
      %96 = sbr.rel (0) target = $region41
    $region40: #{tpu_custom_call.1} parent=1 // pred_region
      %97 = dma.done [#allocation6], 256
    $region41: #{tpu_custom_call.1} parent=1 // pred_fallthru
      _
    // Predicated region
    $region42: #{tpu_custom_call.1} parent=1 // pred_check
      _
    $region43: #{tpu_custom_call.1} parent=1 // pred_check_branch
      %99 = sbr.rel (0) target = $region45
    $region44: #{tpu_custom_call.1} parent=1 // pred_region
      %100 = dma.done [#allocation6], 512
    $region45: #{tpu_custom_call.1} parent=1 // pred_fallthru
      _
    // Predicated region
    $region46: #{tpu_custom_call.1} parent=1 // pred_check
      _
    $region47: #{tpu_custom_call.1} parent=1 // pred_check_branch
      %102 = sbr.rel (0) target = $region49
    $region48: #{tpu_custom_call.1} parent=1 // pred_region
      %103 = dma.done [#allocation9], 512
    $region49: #{tpu_custom_call.1} parent=1 // pred_fallthru
      _
    // Predicated region
    $region50: #{tpu_custom_call.1} parent=1 // pred_check
      _
    $region51: #{tpu_custom_call.1} parent=1 // pred_check_branch
      %105 = sbr.rel (0) target = $region53
    $region52: #{tpu_custom_call.1} parent=1 // pred_region
      %106 = dma.done [#allocation9], 512
    $region53: #{tpu_custom_call.1} parent=1 // pred_fallthru
      _
    // Predicated region
    $region54: #{tpu_custom_call.1} parent=1 // pred_check
      _
    $region55: #{tpu_custom_call.1} parent=1 // pred_check_branch
      %108 = sbr.rel (0) target = $region57
    $region56: #{tpu_custom_call.1} parent=1 // pred_region
      %109 = dma.done [#allocation12], 512
    $region57: #{tpu_custom_call.1} parent=1 // pred_fallthru
      _
    %v110 = vld [vmem:[#allocation2] sm:$0xff]
    %v111 = vld [vmem:[#allocation5] sm:$0xff]
    %v112 = vld [vmem:[#allocation5 + $0x8] sm:$0xff]
    %v113 = vld [vmem:[%s6] sm:$0x1]
    %v115 = vlaneseq
    %v116 = vshrl.u32 %v115, 7
    %v117 = vsub.s32 0, %v116
    %v118 = vrot.slane %v113, %v117
    %vm120 = vcmask 130048
    %v122 = vsel %vm120, %v110, 0
    %124 = vmatprep.subr.mxu0 0.0
    %125 = vmatpush1.msra.mxu0 %v111
    %126 = vmatprep.subr.mxu0 0.0
    %127 = vmatpush1.msra.mxu0 %v112
    %128 = vmatprep.subr.mxu0 0.0
    %129 = vmatpush1.msra.mxu0 0.0
    %130 = vmatprep.subr.mxu0 0.0
    %131 = vmatpush1.msra.mxu0 0.0
    %132 = vmatprep.subr.mxu0 0.0
    %133 = vmatpush1.msra.mxu0 0.0
    %134 = vmatprep.subr.mxu0 0.0
    %135 = vmatpush1.msra.mxu0 0.0
    %136 = vmatprep.subr.mxu0 0.0
    %137 = vmatpush1.msra.mxu0 0.0
    %138 = vmatprep.subr.mxu0 0.0
    %139 = vmatpush1.msra.mxu0 0.0
    %140 = vmatprep.subr.mxu0 0.0
    %141 = vmatpush1.msra.mxu0 0.0
    %142 = vmatprep.subr.mxu0 0.0
    %143 = vmatpush1.msra.mxu0 0.0
    %144 = vmatprep.subr.mxu0 0.0
    %145 = vmatpush1.msra.mxu0 0.0
    %146 = vmatprep.subr.mxu0 0.0
    %147 = vmatpush1.msra.mxu0 0.0
    %148 = vmatprep.subr.mxu0 0.0
    %149 = vmatpush1.msra.mxu0 0.0
    %150 = vmatprep.subr.mxu0 0.0
    %151 = vmatpush1.msra.mxu0 0.0
    %152 = vmatprep.subr.mxu0 0.0
    %153 = vmatpush1.msra.mxu0 0.0
    %154 = vmatprep.subr.mxu0 0.0
    %155 = vmatpush1.msra.mxu0 0.0
    %156 = vmatprep.subr.mxu0 0.0
    %157 = vmatpush1.msra.mxu0 0.0
    %158 = vmatprep.subr.mxu0 0.0
    %159 = vmatpush1.msra.mxu0 0.0
    %160 = vmatprep.subr.mxu0 0.0
    %161 = vmatpush1.msra.mxu0 0.0
    %162 = vmatprep.subr.mxu0 0.0
    %163 = vmatpush1.msra.mxu0 0.0
    %164 = vmatprep.subr.mxu0 0.0
    %165 = vmatpush1.msra.mxu0 0.0
    %166 = vmatprep.subr.mxu0 0.0
    %167 = vmatpush1.msra.mxu0 0.0
    %168 = vmatprep.subr.mxu0 0.0
    %169 = vmatpush1.msra.mxu0 0.0
    %170 = vmatprep.subr.mxu0 0.0
    %171 = vmatpush1.msra.mxu0 0.0
    %172 = vmatprep.subr.mxu0 0.0
    %173 = vmatpush1.msra.mxu0 0.0
    %174 = vmatprep.subr.mxu0 0.0
    %175 = vmatpush1.msra.mxu0 0.0
    %176 = vmatprep.subr.mxu0 0.0
    %177 = vmatpush1.msra.mxu0 0.0
    %178 = vmatprep.subr.mxu0 0.0
    %179 = vmatpush1.msra.mxu0 0.0
    %180 = vmatprep.subr.mxu0 0.0
    %181 = vmatpush1.msra.mxu0 0.0
    %182 = vmatprep.subr.mxu0 0.0
    %183 = vmatpush1.msra.mxu0 0.0
    %184 = vmatprep.subr.mxu0 0.0
    %185 = vmatpush1.msra.mxu0 0.0
    %186 = vmatprep.subr.mxu0 0.0
    %187 = vmatpush1.msra.mxu0 0.0
    %188 = vmatprep.mubr.f32.mxu0 0.0
    %189 = vmatmul.mubr.f32.gmra.mrb[0].mxu0 %v122
    %v190 = vpop.f32.mrb[0].mxu0
    %v191 = vadd.f32 %v118, %v190
    %v192 = vpop.f32.mrb[0].mxu0
    %193 = vdwg.mxu0
    %v194 = vxor.u32 %v191, 2147483648
    %v195 = vmul.f32 %v194, 1.442695
    %v196 = vpow.pop %v195
    %v197 = vadd.f32 %v196, 1.0
    %v198 = vrcp.pop %v197
    %v199 = vmul.f32 1.0, %v198
    %v200 = vmul.f32 %v191, %v199
    %v201 = vld [vmem:[#allocation7] sm:$0xff]
    %v202 = vld [vmem:[#allocation7 + $0x8] sm:$0xff]
    %v203 = vld [vmem:[#allocation7 + $0x10] sm:$0xff]
    %v204 = vld [vmem:[#allocation7 + $0x18] sm:$0xff]
    %v205 = vld [vmem:[%s6 + $0x1] sm:$0x1]
    %v207 = vlaneseq
    %v208 = vshrl.u32 %v207, 7
    %v209 = vsub.s32 0, %v208
    %v210 = vrot.slane %v205, %v209
    %vm212 = vcmask 261120
    %v214 = vsel %vm212, %v200, 0
    %216 = vmatprep.subr.mxu0 0.0
    %217 = vmatpush1.msra.mxu0 %v201
    %218 = vmatprep.subr.mxu0 0.0
    %219 = vmatpush1.msra.mxu0 %v202
    %220 = vmatprep.subr.mxu0 0.0
    %221 = vmatpush1.msra.mxu0 %v203
    %222 = vmatprep.subr.mxu0 0.0
    %223 = vmatpush1.msra.mxu0 %v204
    %224 = vmatprep.subr.mxu0 0.0
    %225 = vmatpush1.msra.mxu0 0.0
    %226 = vmatprep.subr.mxu0 0.0
    %227 = vmatpush1.msra.mxu0 0.0
    %228 = vmatprep.subr.mxu0 0.0
    %229 = vmatpush1.msra.mxu0 0.0
    %230 = vmatprep.subr.mxu0 0.0
    %231 = vmatpush1.msra.mxu0 0.0
    %232 = vmatprep.subr.mxu0 0.0
    %233 = vmatpush1.msra.mxu0 0.0
    %234 = vmatprep.subr.mxu0 0.0
    %235 = vmatpush1.msra.mxu0 0.0
    %236 = vmatprep.subr.mxu0 0.0
    %237 = vmatpush1.msra.mxu0 0.0
    %238 = vmatprep.subr.mxu0 0.0
    %239 = vmatpush1.msra.mxu0 0.0
    %240 = vmatprep.subr.mxu0 0.0
    %241 = vmatpush1.msra.mxu0 0.0
    %242 = vmatprep.subr.mxu0 0.0
    %243 = vmatpush1.msra.mxu0 0.0
    %244 = vmatprep.subr.mxu0 0.0
    %245 = vmatpush1.msra.mxu0 0.0
    %246 = vmatprep.subr.mxu0 0.0
    %247 = vmatpush1.msra.mxu0 0.0
    %248 = vmatprep.subr.mxu0 0.0
    %249 = vmatpush1.msra.mxu0 0.0
    %250 = vmatprep.subr.mxu0 0.0
    %251 = vmatpush1.msra.mxu0 0.0
    %252 = vmatprep.subr.mxu0 0.0
    %253 = vmatpush1.msra.mxu0 0.0
    %254 = vmatprep.subr.mxu0 0.0
    %255 = vmatpush1.msra.mxu0 0.0
    %256 = vmatprep.subr.mxu0 0.0
    %257 = vmatpush1.msra.mxu0 0.0
    %258 = vmatprep.subr.mxu0 0.0
    %259 = vmatpush1.msra.mxu0 0.0
    %260 = vmatprep.subr.mxu0 0.0
    %261 = vmatpush1.msra.mxu0 0.0
    %262 = vmatprep.subr.mxu0 0.0
    %263 = vmatpush1.msra.mxu0 0.0
    %264 = vmatprep.subr.mxu0 0.0
    %265 = vmatpush1.msra.mxu0 0.0
    %266 = vmatprep.subr.mxu0 0.0
    %267 = vmatpush1.msra.mxu0 0.0
    %268 = vmatprep.subr.mxu0 0.0
    %269 = vmatpush1.msra.mxu0 0.0
    %270 = vmatprep.subr.mxu0 0.0
    %271 = vmatpush1.msra.mxu0 0.0
    %272 = vmatprep.subr.mxu0 0.0
    %273 = vmatpush1.msra.mxu0 0.0
    %274 = vmatprep.subr.mxu0 0.0
    %275 = vmatpush1.msra.mxu0 0.0
    %276 = vmatprep.subr.mxu0 0.0
    %277 = vmatpush1.msra.mxu0 0.0
    %278 = vmatprep.subr.mxu0 0.0
    %279 = vmatpush1.msra.mxu0 0.0
    %280 = vmatprep.mubr.f32.mxu0 0.0
    %281 = vmatmul.mubr.f32.gmra.mrb[0].mxu0 %v214
    %v282 = vpop.f32.mrb[0].mxu0
    %v283 = vadd.f32 %v210, %v282
    %v284 = vpop.f32.mrb[0].mxu0
    %285 = vdwg.mxu0
    %v286 = vxor.u32 %v283, 2147483648
    %v287 = vmul.f32 %v286, 1.442695
    %v288 = vpow.pop %v287
    %v289 = vadd.f32 %v288, 1.0
    %v290 = vrcp.pop %v289
    %v291 = vmul.f32 1.0, %v290
    %v292 = vmul.f32 %v283, %v291
    %v293 = vld [vmem:[#allocation8] sm:$0xff]
    %v294 = vld [vmem:[#allocation8 + $0x8] sm:$0xff]
    %v295 = vld [vmem:[#allocation8 + $0x10] sm:$0xff]
    %v296 = vld [vmem:[#allocation8 + $0x18] sm:$0xff]
    %v297 = vld [vmem:[%s6 + $0x2] sm:$0x1]
    %v299 = vlaneseq
    %v300 = vshrl.u32 %v299, 7
    %v301 = vsub.s32 0, %v300
    %v302 = vrot.slane %v297, %v301
    %v305 = vsel %vm212, %v292, 0
    %307 = vmatprep.subr.mxu0 0.0
    %308 = vmatpush1.msra.mxu0 %v293
    %309 = vmatprep.subr.mxu0 0.0
    %310 = vmatpush1.msra.mxu0 %v294
    %311 = vmatprep.subr.mxu0 0.0
    %312 = vmatpush1.msra.mxu0 %v295
    %313 = vmatprep.subr.mxu0 0.0
    %314 = vmatpush1.msra.mxu0 %v296
    %315 = vmatprep.subr.mxu0 0.0
    %316 = vmatpush1.msra.mxu0 0.0
    %317 = vmatprep.subr.mxu0 0.0
    %318 = vmatpush1.msra.mxu0 0.0
    %319 = vmatprep.subr.mxu0 0.0
    %320 = vmatpush1.msra.mxu0 0.0
    %321 = vmatprep.subr.mxu0 0.0
    %322 = vmatpush1.msra.mxu0 0.0
    %323 = vmatprep.subr.mxu0 0.0
    %324 = vmatpush1.msra.mxu0 0.0
    %325 = vmatprep.subr.mxu0 0.0
    %326 = vmatpush1.msra.mxu0 0.0
    %327 = vmatprep.subr.mxu0 0.0
    %328 = vmatpush1.msra.mxu0 0.0
    %329 = vmatprep.subr.mxu0 0.0
    %330 = vmatpush1.msra.mxu0 0.0
    %331 = vmatprep.subr.mxu0 0.0
    %332 = vmatpush1.msra.mxu0 0.0
    %333 = vmatprep.subr.mxu0 0.0
    %334 = vmatpush1.msra.mxu0 0.0
    %335 = vmatprep.subr.mxu0 0.0
    %336 = vmatpush1.msra.mxu0 0.0
    %337 = vmatprep.subr.mxu0 0.0
    %338 = vmatpush1.msra.mxu0 0.0
    %339 = vmatprep.subr.mxu0 0.0
    %340 = vmatpush1.msra.mxu0 0.0
    %341 = vmatprep.subr.mxu0 0.0
    %342 = vmatpush1.msra.mxu0 0.0
    %343 = vmatprep.subr.mxu0 0.0
    %344 = vmatpush1.msra.mxu0 0.0
    %345 = vmatprep.subr.mxu0 0.0
    %346 = vmatpush1.msra.mxu0 0.0
    %347 = vmatprep.subr.mxu0 0.0
    %348 = vmatpush1.msra.mxu0 0.0
    %349 = vmatprep.subr.mxu0 0.0
    %350 = vmatpush1.msra.mxu0 0.0
    %351 = vmatprep.subr.mxu0 0.0
    %352 = vmatpush1.msra.mxu0 0.0
    %353 = vmatprep.subr.mxu0 0.0
    %354 = vmatpush1.msra.mxu0 0.0
    %355 = vmatprep.subr.mxu0 0.0
    %356 = vmatpush1.msra.mxu0 0.0
    %357 = vmatprep.subr.mxu0 0.0
    %358 = vmatpush1.msra.mxu0 0.0
    %359 = vmatprep.subr.mxu0 0.0
    %360 = vmatpush1.msra.mxu0 0.0
    %361 = vmatprep.subr.mxu0 0.0
    %362 = vmatpush1.msra.mxu0 0.0
    %363 = vmatprep.subr.mxu0 0.0
    %364 = vmatpush1.msra.mxu0 0.0
    %365 = vmatprep.subr.mxu0 0.0
    %366 = vmatpush1.msra.mxu0 0.0
    %367 = vmatprep.subr.mxu0 0.0
    %368 = vmatpush1.msra.mxu0 0.0
    %369 = vmatprep.subr.mxu0 0.0
    %370 = vmatpush1.msra.mxu0 0.0
    %371 = vmatprep.mubr.f32.mxu0 0.0
    %372 = vmatmul.mubr.f32.gmra.mrb[0].mxu0 %v305
    %v373 = vpop.f32.mrb[0].mxu0
    %v374 = vadd.f32 %v302, %v373
    %v375 = vpop.f32.mrb[0].mxu0
    %376 = vdwg.mxu0
    %v377 = vxor.u32 %v374, 2147483648
    %v378 = vmul.f32 %v377, 1.442695
    %v379 = vpow.pop %v378
    %v380 = vadd.f32 %v379, 1.0
    %v381 = vrcp.pop %v380
    %v382 = vmul.f32 1.0, %v381
    %v383 = vmul.f32 %v374, %v382
    %v384 = vsel %vm212, %v383, 0.0
    %385 = vadd.xlane.f32.xlu0 %v384
    %v386 = vpop.xlane.xlu0 %385
    %v387 = vrcp.pop 32.0
    %v388 = vmul.f32 %v386, %v387
    %v389 = vsub.f32 %v383, %v388
    %v390 = vmul.f32 %v389, %v389
    %v391 = vsel %vm212, %v390, 0.0
    %392 = vadd.xlane.f32.xlu0 %v391
    %v393 = vpop.xlane.xlu0 %392
    %v394 = vmul.f32 %v393, %v387
    %v395 = vadd.f32 %v394, 1e-05
    %v396 = vrsqrt.pop %v395
    %v397 = vmul.f32 %v389, %v396
    %v398 = vld [vmem:[#allocation10] sm:$0xff]
    %v399 = vld [vmem:[#allocation10 + $0x8] sm:$0xff]
    %v400 = vld [vmem:[#allocation10 + $0x10] sm:$0xff]
    %v401 = vld [vmem:[#allocation10 + $0x18] sm:$0xff]
    %v402 = vld [vmem:[%s6 + $0x3] sm:$0x1]
    %v404 = vlaneseq
    %v405 = vshrl.u32 %v404, 7
    %v406 = vsub.s32 0, %v405
    %v407 = vrot.slane %v402, %v406
    %v410 = vsel %vm212, %v397, 0
    %412 = vmatprep.subr.mxu0 0.0
    %413 = vmatpush1.msra.mxu0 %v398
    %414 = vmatprep.subr.mxu0 0.0
    %415 = vmatpush1.msra.mxu0 %v399
    %416 = vmatprep.subr.mxu0 0.0
    %417 = vmatpush1.msra.mxu0 %v400
    %418 = vmatprep.subr.mxu0 0.0
    %419 = vmatpush1.msra.mxu0 %v401
    %420 = vmatprep.subr.mxu0 0.0
    %421 = vmatpush1.msra.mxu0 0.0
    %422 = vmatprep.subr.mxu0 0.0
    %423 = vmatpush1.msra.mxu0 0.0
    %424 = vmatprep.subr.mxu0 0.0
    %425 = vmatpush1.msra.mxu0 0.0
    %426 = vmatprep.subr.mxu0 0.0
    %427 = vmatpush1.msra.mxu0 0.0
    %428 = vmatprep.subr.mxu0 0.0
    %429 = vmatpush1.msra.mxu0 0.0
    %430 = vmatprep.subr.mxu0 0.0
    %431 = vmatpush1.msra.mxu0 0.0
    %432 = vmatprep.subr.mxu0 0.0
    %433 = vmatpush1.msra.mxu0 0.0
    %434 = vmatprep.subr.mxu0 0.0
    %435 = vmatpush1.msra.mxu0 0.0
    %436 = vmatprep.subr.mxu0 0.0
    %437 = vmatpush1.msra.mxu0 0.0
    %438 = vmatprep.subr.mxu0 0.0
    %439 = vmatpush1.msra.mxu0 0.0
    %440 = vmatprep.subr.mxu0 0.0
    %441 = vmatpush1.msra.mxu0 0.0
    %442 = vmatprep.subr.mxu0 0.0
    %443 = vmatpush1.msra.mxu0 0.0
    %444 = vmatprep.subr.mxu0 0.0
    %445 = vmatpush1.msra.mxu0 0.0
    %446 = vmatprep.subr.mxu0 0.0
    %447 = vmatpush1.msra.mxu0 0.0
    %448 = vmatprep.subr.mxu0 0.0
    %449 = vmatpush1.msra.mxu0 0.0
    %450 = vmatprep.subr.mxu0 0.0
    %451 = vmatpush1.msra.mxu0 0.0
    %452 = vmatprep.subr.mxu0 0.0
    %453 = vmatpush1.msra.mxu0 0.0
    %454 = vmatprep.subr.mxu0 0.0
    %455 = vmatpush1.msra.mxu0 0.0
    %456 = vmatprep.subr.mxu0 0.0
    %457 = vmatpush1.msra.mxu0 0.0
    %458 = vmatprep.subr.mxu0 0.0
    %459 = vmatpush1.msra.mxu0 0.0
    %460 = vmatprep.subr.mxu0 0.0
    %461 = vmatpush1.msra.mxu0 0.0
    %462 = vmatprep.subr.mxu0 0.0
    %463 = vmatpush1.msra.mxu0 0.0
    %464 = vmatprep.subr.mxu0 0.0
    %465 = vmatpush1.msra.mxu0 0.0
    %466 = vmatprep.subr.mxu0 0.0
    %467 = vmatpush1.msra.mxu0 0.0
    %468 = vmatprep.subr.mxu0 0.0
    %469 = vmatpush1.msra.mxu0 0.0
    %470 = vmatprep.subr.mxu0 0.0
    %471 = vmatpush1.msra.mxu0 0.0
    %472 = vmatprep.subr.mxu0 0.0
    %473 = vmatpush1.msra.mxu0 0.0
    %474 = vmatprep.subr.mxu0 0.0
    %475 = vmatpush1.msra.mxu0 0.0
    %476 = vmatprep.mubr.f32.mxu0 0.0
    %477 = vmatmul.mubr.f32.gmra.mrb[0].mxu0 %v410
    %v478 = vpop.f32.mrb[0].mxu0
    %v479 = vadd.f32 %v407, %v478
    %v480 = vpop.f32.mrb[0].mxu0
    %481 = vdwg.mxu0
    %v482 = vxor.u32 %v479, 2147483648
    %v483 = vmul.f32 %v482, 1.442695
    %v484 = vpow.pop %v483
    %v485 = vadd.f32 %v484, 1.0
    %v486 = vrcp.pop %v485
    %v487 = vmul.f32 1.0, %v486
    %v488 = vtanh.pop %v479
    %490 = vrot.lane.b32.xlu0 %v488, 96
    %v491 = vpop.permute.xlu0 %490
    %v493 = vmul.f32 %v487, %v491
    %v494 = vtanh.pop %v493
    %496 = vrot.lane.b32.xlu0 %v494, 64
    %v497 = vpop.permute.xlu0 %496
    %v499 = vmul.f32 %v487, %v497
    %v500 = vld [vmem:[#allocation11] sm:$0xff]
    %v501 = vld [vmem:[#allocation11 + $0x8] sm:$0xff]
    %v502 = vld [vmem:[#allocation11 + $0x10] sm:$0xff]
    %v503 = vld [vmem:[#allocation11 + $0x18] sm:$0xff]
    %v504 = vld [vmem:[%s6 + $0x4] sm:$0x1]
    %v506 = vlaneseq
    %v507 = vshrl.u32 %v506, 7
    %v508 = vsub.s32 0, %v507
    %v509 = vrot.slane %v504, %v508
    %512 = vrot.lane.b32.xlu0 %v499, 64
    %v513 = vpop.permute.xlu0 %512
    %v514 = vsel %vm212, %v513, 0
    %516 = vmatprep.subr.mxu0 0.0
    %517 = vmatpush1.msra.mxu0 %v500
    %518 = vmatprep.subr.mxu0 0.0
    %519 = vmatpush1.msra.mxu0 %v501
    %520 = vmatprep.subr.mxu0 0.0
    %521 = vmatpush1.msra.mxu0 %v502
    %522 = vmatprep.subr.mxu0 0.0
    %523 = vmatpush1.msra.mxu0 %v503
    %524 = vmatprep.subr.mxu0 0.0
    %525 = vmatpush1.msra.mxu0 0.0
    %526 = vmatprep.subr.mxu0 0.0
    %527 = vmatpush1.msra.mxu0 0.0
    %528 = vmatprep.subr.mxu0 0.0
    %529 = vmatpush1.msra.mxu0 0.0
    %530 = vmatprep.subr.mxu0 0.0
    %531 = vmatpush1.msra.mxu0 0.0
    %532 = vmatprep.subr.mxu0 0.0
    %533 = vmatpush1.msra.mxu0 0.0
    %534 = vmatprep.subr.mxu0 0.0
    %535 = vmatpush1.msra.mxu0 0.0
    %536 = vmatprep.subr.mxu0 0.0
    %537 = vmatpush1.msra.mxu0 0.0
    %538 = vmatprep.subr.mxu0 0.0
    %539 = vmatpush1.msra.mxu0 0.0
    %540 = vmatprep.subr.mxu0 0.0
    %541 = vmatpush1.msra.mxu0 0.0
    %542 = vmatprep.subr.mxu0 0.0
    %543 = vmatpush1.msra.mxu0 0.0
    %544 = vmatprep.subr.mxu0 0.0
    %545 = vmatpush1.msra.mxu0 0.0
    %546 = vmatprep.subr.mxu0 0.0
    %547 = vmatpush1.msra.mxu0 0.0
    %548 = vmatprep.subr.mxu0 0.0
    %549 = vmatpush1.msra.mxu0 0.0
    %550 = vmatprep.subr.mxu0 0.0
    %551 = vmatpush1.msra.mxu0 0.0
    %552 = vmatprep.subr.mxu0 0.0
    %553 = vmatpush1.msra.mxu0 0.0
    %554 = vmatprep.subr.mxu0 0.0
    %555 = vmatpush1.msra.mxu0 0.0
    %556 = vmatprep.subr.mxu0 0.0
    %557 = vmatpush1.msra.mxu0 0.0
    %558 = vmatprep.subr.mxu0 0.0
    %559 = vmatpush1.msra.mxu0 0.0
    %560 = vmatprep.subr.mxu0 0.0
    %561 = vmatpush1.msra.mxu0 0.0
    %562 = vmatprep.subr.mxu0 0.0
    %563 = vmatpush1.msra.mxu0 0.0
    %564 = vmatprep.subr.mxu0 0.0
    %565 = vmatpush1.msra.mxu0 0.0
    %566 = vmatprep.subr.mxu0 0.0
    %567 = vmatpush1.msra.mxu0 0.0
    %568 = vmatprep.subr.mxu0 0.0
    %569 = vmatpush1.msra.mxu0 0.0
    %570 = vmatprep.subr.mxu0 0.0
    %571 = vmatpush1.msra.mxu0 0.0
    %572 = vmatprep.subr.mxu0 0.0
    %573 = vmatpush1.msra.mxu0 0.0
    %574 = vmatprep.subr.mxu0 0.0
    %575 = vmatpush1.msra.mxu0 0.0
    %576 = vmatprep.subr.mxu0 0.0
    %577 = vmatpush1.msra.mxu0 0.0
    %578 = vmatprep.subr.mxu0 0.0
    %579 = vmatpush1.msra.mxu0 0.0
    %580 = vmatprep.mubr.f32.mxu0 0.0
    %581 = vmatmul.mubr.f32.gmra.mrb[0].mxu0 %v514
    %v582 = vpop.f32.mrb[0].mxu0
    %v583 = vadd.f32 %v509, %v582
    %v584 = vpop.f32.mrb[0].mxu0
    %585 = vdwg.mxu0
    %v586 = vld [vmem:[%s7] sm:$0xf]
    %v587 = vunpack.c.l.bf16 %v586
    %v588 = vadd.f32 %v583, %v587
    %589 = vmax.xlane.f32.xlu0 %v588
    %v590 = vpop.xlane.xlu0 %589
    %v591 = vsub.f32 %v588, %v590
    %v592 = vmul.f32 %v591, 1.442695
    %v593 = vpow.pop %v592
    %594 = vadd.xlane.f32.xlu0 %v593
    %v595 = vpop.xlane.xlu0 %594
    %v596 = vrcp.pop %v595
    %v597 = vmul.f32 %v595, %v596
    %v598 = vsub.f32 2.0, %v597
    %v599 = vmul.f32 %v596, %v598
    %v600 = vmul.f32 %v593, %v599
    %601 = vst [vmem:[#allocation13] sm:$0xff] %v600
    // Predicated region
    $region58: #{tpu_custom_call.1} parent=1 // pred_check
      _
    $region59: #{tpu_custom_call.1} parent=1 // pred_check_branch
      %603 = sbr.rel (0) target = $region61
    $region60: #{tpu_custom_call.1} parent=1 // pred_region
      %s605 = ssub.s32 128, 128
      %606 = vsyncadd [#allocation4], %s605
      %s608 = sshll.u32 [#allocation13], 4
      %s609 = int_to_ptr.vmem [resolvable:$true] %s608
      %611 = dma.vmem_to_hbm [thread:$0]  %s609, 128, %s8, [#allocation4]
    $region61: #{tpu_custom_call.1} parent=1 // pred_fallthru
      _
    // Predicated region
    $region62: #{tpu_custom_call.1} parent=1 // pred_check
      _
    $region63: #{tpu_custom_call.1} parent=1 // pred_check_branch
      %613 = sbr.rel (0) target = $region65
    $region64: #{tpu_custom_call.1} parent=1 // pred_region
      %614 = dma.done [#allocation4], 128
    $region65: #{tpu_custom_call.1} parent=1 // pred_fallthru
      _
    %615 = vsyncpa [#allocation3], 1
    %616 = vsyncpa [#allocation6], 1
    %617 = vsyncpa [#allocation9], 1
    %618 = vsyncpa [#allocation12], 1
    %619 = vsyncpa [#allocation4], 1

</llo_original>
